<compile_context>
chip_gen: v7x
topology: tpu7x:2x2x1
jax: 0.10.0
libtpu: 0.0.40
codegen_flags: <defaults>
</compile_context>

<pallas_src>
import functools

import numpy as np
import jax
import jax.numpy as jnp
from jax.experimental import pallas as pl
from jax.experimental.pallas import tpu as pltpu


def _round_up(x, m):
    return -(-x // m) * m


def _vmem_physical_bytes():
    """Physical per-core VMEM (v5e/v6e: 128 MiB, v7x: 64 MiB); safe fallback."""
    try:
        return int(pltpu.get_tpu_info().vmem_capacity_bytes)
    except Exception:
        return 64 << 20


# --------------------------------------------------------------------------- #
# Kernels
# --------------------------------------------------------------------------- #
def _gated_mlp_kernel_resident(n_streams, *refs):
    """Single-hidden-step path: no accumulator, weights resident in VMEM.

    refs = (x_0..x_{n-1}, w1_feat, w1_gate, w2, o_0..o_{n-1})
      x_i : (tm, in)       o_i : (tm, out)
      w1_*: (in, hidden)   w2  : (hidden, out)
    """
    x_refs = refs[:n_streams]
    w1f_ref, w1g_ref, w2_ref = refs[n_streams:n_streams + 3]
    o_refs = refs[n_streams + 3:]

    w1f = w1f_ref[...]
    w1g = w1g_ref[...]
    w2 = w2_ref[...]
    for x_ref, o_ref in zip(x_refs, o_refs):
        x = x_ref[...]
        # fc1 as two lane-aligned MXU dots (no in-kernel slicing of a 2*hidden slab).
        feat = jnp.dot(x, w1f, preferred_element_type=jnp.float32)
        gate = jnp.dot(x, w1g, preferred_element_type=jnp.float32)
        a = feat * (gate * jax.nn.sigmoid(gate))          # SiLU in f32 (EUP + VPU)
        o_ref[...] = jnp.dot(a.astype(w2.dtype), w2,
                             preferred_element_type=jnp.float32).astype(o_ref.dtype)


def _gated_mlp_kernel_htiled(n_streams, *refs):
    """Tiled-hidden path: grid = (M tiles, hidden tiles), f32 accumulators.

    refs = (x_0.., w1_feat, w1_gate, w2, o_0.., acc_0..)
    """
    x_refs = refs[:n_streams]
    w1f_ref, w1g_ref, w2_ref = refs[n_streams:n_streams + 3]
    o_refs = refs[n_streams + 3:n_streams + 3 + n_streams]
    acc_refs = refs[n_streams + 3 + n_streams:]

    kh = pl.program_id(1)
    last = pl.num_programs(1) - 1
    w1f = w1f_ref[...]
    w1g = w1g_ref[...]
    w2 = w2_ref[...]
    for x_ref, o_ref, acc_ref in zip(x_refs, o_refs, acc_refs):
        x = x_ref[...]
        feat = jnp.dot(x, w1f, preferred_element_type=jnp.float32)
        gate = jnp.dot(x, w1g, preferred_element_type=jnp.float32)
        a = feat * (gate * jax.nn.sigmoid(gate))
        part = jnp.dot(a.astype(w2.dtype), w2, preferred_element_type=jnp.float32)

        @pl.when(kh == 0)
        def _init(acc_ref=acc_ref, part=part):
            acc_ref[...] = part                           # init with first dot (no zero-fill)

        @pl.when(kh != 0)
        def _accumulate(acc_ref=acc_ref, part=part):
            acc_ref[...] += part

        @pl.when(kh == last)
        def _finalize(o_ref=o_ref, acc_ref=acc_ref):
            o_ref[...] = acc_ref[...].astype(o_ref.dtype)


# --------------------------------------------------------------------------- #
# Tiling heuristics
# --------------------------------------------------------------------------- #
def _row_tiling(m_max, itemsize):
    """(tm, m_pad).  Grid steps are a sequential loop (~0.35us each), so keep a
    single M tile unless M is large enough that DMA/compute overlap and v7x
    megacore sharding (>=256 rows per core) pay for the extra steps."""
    align = 8 * max(1, 4 // itemsize)      # sublane rows per vreg (f32: 8, bf16: 16)
    if m_max <= 2048:
        tm = _round_up(m_max, align)
        return tm, tm
    tm = 512                               # large M: split for pipelining / megacore
    return tm, _round_up(m_max, tm)


def _working_set_bytes(tm, th, in_features, out_features, n_streams, itemsize):
    """Conservative per-step VMEM footprint (double-buffered operands + f32 live)."""
    weights = 2 * (2 * in_features * th + th * out_features) * itemsize
    acts = 2 * n_streams * (tm * in_features + tm * out_features) * itemsize
    f32_live = n_streams * (3 * tm * th + 2 * tm * out_features) * 4
    return weights + acts + f32_live


def _hidden_tiling(hidden, in_features, out_features, tm, n_streams, itemsize, budget):
    """th == hidden (weights resident, single step, no accumulator) whenever it
    fits `budget`; otherwise MXU-width-aligned tiles (256 on v6e/v7x, 128 min)."""
    if _working_set_bytes(tm, hidden, in_features, out_features,
                          n_streams, itemsize) <= budget:
        return hidden
    for th in (256, 128):
        if hidden % th == 0:
            return th
    return hidden          # hidden not a multiple of 128: keep a single step


# --------------------------------------------------------------------------- #
# Wrapper
# --------------------------------------------------------------------------- #
def _gated_mlp_streams(xs, w1_feat, w1_gate, w2, *, out_dtype=None):
    """Fused GatedMLP over a tuple of 2-D row-major streams (m_i, in)."""
    n_streams = len(xs)
    in_features, hidden = w1_feat.shape
    out_features = w2.shape[1]
    if out_dtype is None:
        out_dtype = xs[0].dtype
    itemsize = np.dtype(xs[0].dtype).itemsize

    ms = [int(x.shape[0]) for x in xs]
    tm, m_pad = _row_tiling(max(ms), itemsize)
    # Padding only triggers for ragged / non-8-aligned streams; the common case
    # (equal, aligned streams) adds no extra HBM pass.
    xs = tuple(x if x.shape[0] == m_pad else jnp.pad(x, ((0, m_pad - x.shape[0]), (0, 0)))
               for x in xs)
    m_steps = m_pad // tm

    vmem_phys = _vmem_physical_bytes()
    th = _hidden_tiling(hidden, in_features, out_features, tm, n_streams, itemsize,
                        budget=vmem_phys // 2)
    n_h = hidden // th

    footprint = _working_set_bytes(tm, th, in_features, out_features, n_streams, itemsize)
    # Actual footprint + 25% headroom, capped at 5/8 of physical VMEM
    # (40 MiB on v7x's 64 MiB, 80 MiB on v5e/v6e's 128 MiB).
    vmem_limit = int(min(max(footprint + footprint // 4, 16 << 20), vmem_phys * 5 // 8))

    out_shape = tuple(jax.ShapeDtypeStruct((m_pad, out_features), out_dtype)
                      for _ in range(n_streams))

    if n_h == 1:
        # Fast path: whole hidden dim per step; weight block indices never change,
        # so they are DMA'd once and stay resident across M tiles; no accumulator.
        grid = (m_steps,)
        x_spec = pl.BlockSpec((tm, in_features), lambda i: (i, 0))
        w1_spec = pl.BlockSpec((in_features, hidden), lambda i: (0, 0))
        w2_spec = pl.BlockSpec((hidden, out_features), lambda i: (0, 0))
        o_spec = pl.BlockSpec((tm, out_features), lambda i: (i, 0))
        in_specs = [x_spec] * n_streams + [w1_spec, w1_spec, w2_spec]
        out_specs = tuple([o_spec] * n_streams)
        scratch_shapes = ()
        kernel = functools.partial(_gated_mlp_kernel_resident, n_streams)
        semantics = ("parallel",)
    else:
        # General path: hidden tiled on the last ('arbitrary') axis with f32
        # accumulators.  Weights are re-streamed per step, so deepen their
        # buffering (hides weight DMA on bandwidth-poor v5e).
        grid = (m_steps, n_h)
        x_spec = pl.BlockSpec((tm, in_features), lambda i, kh: (i, 0))
        w1_spec = pl.BlockSpec((in_features, th), lambda i, kh: (0, kh),
                               pipeline_mode=pl.Buffered(3))
        w2_spec = pl.BlockSpec((th, out_features), lambda i, kh: (kh, 0),
                               pipeline_mode=pl.Buffered(3))
        o_spec = pl.BlockSpec((tm, out_features), lambda i, kh: (i, 0))
        in_specs = [x_spec] * n_streams + [w1_spec, w1_spec, w2_spec]
        out_specs = tuple([o_spec] * n_streams)
        scratch_shapes = tuple(pltpu.VMEM((tm, out_features), jnp.float32)
                               for _ in range(n_streams))
        kernel = functools.partial(_gated_mlp_kernel_htiled, n_streams)
        semantics = ("parallel", "arbitrary")

    outs = pl.pallas_call(
        kernel,
        out_shape=out_shape,
        grid_spec=pltpu.PrefetchScalarGridSpec(
            num_scalar_prefetch=0,
            grid=grid,
            in_specs=in_specs,
            out_specs=out_specs,
            scratch_shapes=scratch_shapes,
        ),
        compiler_params=pltpu.CompilerParams(
            dimension_semantics=semantics,
            vmem_limit_bytes=vmem_limit),
    )(*xs, w1_feat, w1_gate, w2)

    return tuple(o if m == m_pad else o[:m] for o, m in zip(outs, ms))


def gated_mlp_forward(u_0, u_1, fc1_weight, fc2_weight, *, mxu_operand_dtype=None):
    """GatedMLP.forward(u_0, u_1) -> (y_0, y_1), Pallas TPU implementation.

    fc1_weight: (2*hidden, in_features)   (torch fc1.weight layout)
    fc2_weight: (out_features, hidden)    (torch fc2.weight layout)
    mxu_operand_dtype: optional (e.g. jnp.bfloat16) cast of MXU operands for
      v6e/v7x matmul throughput; SiLU + accumulation stay f32, outputs keep the
      input dtype.  Off by default (exact module numerics).
      # TODO(synk): fp8 weight operands on v7x (halves weight DMA) not wired up.
    """
    in_features = u_0.shape[-1]
    hidden = fc1_weight.shape[0] // 2
    out_features = fc2_weight.shape[0]

    # One-time XLA-side layout plumbing: transpose to (in, hidden)/(hidden, out)
    # and split fc1 into the feat/gate halves implied by torch.chunk(2, dim=-1).
    w1_feat = fc1_weight[:hidden, :].T
    w1_gate = fc1_weight[hidden:, :].T
    w2 = fc2_weight.T

    # (b, s, in) -> (b*s, in) is a metadata-only reshape (row-major), not an HBM
    # copy; same for the inverse reshape of the outputs.  No concat, no slices.
    x0 = u_0.reshape(-1, in_features)
    x1 = u_1.reshape(-1, in_features)
    if mxu_operand_dtype is not None:
        w1_feat = w1_feat.astype(mxu_operand_dtype)
        w1_gate = w1_gate.astype(mxu_operand_dtype)
        w2 = w2.astype(mxu_operand_dtype)
        x0 = x0.astype(mxu_operand_dtype)
        x1 = x1.astype(mxu_operand_dtype)

    y0, y1 = _gated_mlp_streams((x0, x1), w1_feat, w1_gate, w2, out_dtype=u_0.dtype)
    return (y0.reshape(*u_0.shape[:-1], out_features),
            y1.reshape(*u_1.shape[:-1], out_features))


# --------------------------------------------------------------------------- #
# Pure-JAX reference (mirrors the torch module exactly)
# --------------------------------------------------------------------------- #
def _reference(u, fc1_weight, fc2_weight):
    hidden = fc1_weight.shape[0] // 2
    h = jnp.einsum("...i,hi->...h", u, fc1_weight)
    feat, gate = h[..., :hidden], h[..., hidden:]
    return jnp.einsum("...h,oh->...o", feat * jax.nn.silu(gate), fc2_weight)


if __name__ == "__main__":
    # Module config: GatedMLP(in_features=128) ->
    #   hidden = round_up(int(8*128/3), 128) = 384, out = in = 128.
    in_features = 128
    multiple_of = 128
    hidden_features = int(8 * in_features / 3)
    hidden_features = (hidden_features + multiple_of - 1) // multiple_of * multiple_of
    out_features = in_features

    batch, seq = 2, 8
    dtype = jnp.float32

    key = jax.random.PRNGKey(0)
    k_u0, k_u1, k_w1, k_w2 = jax.random.split(key, 4)

    u_0 = jax.random.normal(k_u0, (batch, seq, in_features), dtype=dtype)
    u_1 = jax.random.normal(k_u1, (batch, seq, in_features), dtype=dtype)

    # Weights in torch nn.Linear layout: fc1.weight (2H, in), fc2.weight (out, H).
    fc1_weight = jax.random.normal(k_w1, (2 * hidden_features, in_features),
                                   dtype=dtype) * (1.0 / float(np.sqrt(in_features)))
    fc2_weight = jax.random.normal(k_w2, (out_features, hidden_features),
                                   dtype=dtype) * (1.0 / float(np.sqrt(hidden_features)))

    y0, y1 = gated_mlp_forward(u_0, u_1, fc1_weight, fc2_weight)
    y0 = jax.block_until_ready(y0)
    y1 = jax.block_until_ready(y1)

    r0 = _reference(u_0, fc1_weight, fc2_weight)
    r1 = _reference(u_1, fc1_weight, fc2_weight)
    assert y0.shape == (batch, seq, out_features)
    assert y1.shape == (batch, seq, out_features)
    # Tolerance accounts for the TPU MXU's default-precision f32 matmul
    # (bf16-pass decomposition), which may differ in pass structure between the
    # Mosaic kernel and the XLA reference einsums.
    assert jnp.allclose(y0, r0, atol=2e-2, rtol=2e-2), float(jnp.max(jnp.abs(y0 - r0)))
    assert jnp.allclose(y1, r1, atol=2e-2, rtol=2e-2), float(jnp.max(jnp.abs(y1 - r1)))

    print("KERNEL_OK")
</pallas_src>

<mosaic_0001>
module attributes {stable_mosaic.version = 11 : i64} {
  func.func @_gated_mlp_kernel_resident(%arg0: i32, %arg1: memref<16x128xf32, #tpu.memory_space<vmem>>, %arg2: memref<16x128xf32, #tpu.memory_space<vmem>>, %arg3: memref<128x384xf32, #tpu.memory_space<vmem>>, %arg4: memref<128x384xf32, #tpu.memory_space<vmem>>, %arg5: memref<384x128xf32, #tpu.memory_space<vmem>>, %arg6: memref<16x128xf32, #tpu.memory_space<vmem>>, %arg7: memref<16x128xf32, #tpu.memory_space<vmem>>) attributes {dimension_semantics = [#tpu.dimension_semantics<parallel>], iteration_bounds = array<i64: 1>, scalar_prefetch = 0 : i64, scratch_operands = 0 : i64, tpu.core_type = #tpu.core_type<tc>, window_params = [{transform_indices = @transform_0, window_bounds = array<i64: 16, 128>}, {transform_indices = @transform_1, window_bounds = array<i64: 16, 128>}, {pipeline_mode = #tpu.pipeline_mode<synchronous>, transform_indices = @transform_2, window_bounds = array<i64: 128, 384>}, {pipeline_mode = #tpu.pipeline_mode<synchronous>, transform_indices = @transform_3, window_bounds = array<i64: 128, 384>}, {pipeline_mode = #tpu.pipeline_mode<synchronous>, transform_indices = @transform_4, window_bounds = array<i64: 384, 128>}, {transform_indices = @transform_5, window_bounds = array<i64: 16, 128>}, {transform_indices = @transform_6, window_bounds = array<i64: 16, 128>}]} {
    %c0 = arith.constant 0 : index
    %c0_0 = arith.constant 0 : index
    %0 = vector.load %arg3[%c0, %c0_0] : memref<128x384xf32, #tpu.memory_space<vmem>>, vector<128x384xf32>
    %c0_1 = arith.constant 0 : index
    %c0_2 = arith.constant 0 : index
    %1 = vector.load %arg4[%c0_1, %c0_2] : memref<128x384xf32, #tpu.memory_space<vmem>>, vector<128x384xf32>
    %c0_3 = arith.constant 0 : index
    %c0_4 = arith.constant 0 : index
    %2 = vector.load %arg5[%c0_3, %c0_4] : memref<384x128xf32, #tpu.memory_space<vmem>>, vector<384x128xf32>
    %c0_5 = arith.constant 0 : index
    %c0_6 = arith.constant 0 : index
    %3 = vector.load %arg1[%c0_5, %c0_6] : memref<16x128xf32, #tpu.memory_space<vmem>>, vector<16x128xf32>
    %cst = arith.constant dense<0.000000e+00> : vector<16x384xf32>
    %4 = tpu.matmul %3, %0, %cst {dimension_numbers = #tpu.dot_dimension_numbers<[1], [0], [0], [1], [0, 0, 1, 1], [], []>} : vector<16x128xf32>, vector<128x384xf32>, vector<16x384xf32> -> vector<16x384xf32>
    %cst_7 = arith.constant dense<0.000000e+00> : vector<16x384xf32>
    %5 = tpu.matmul %3, %1, %cst_7 {dimension_numbers = #tpu.dot_dimension_numbers<[1], [0], [0], [1], [0, 0, 1, 1], [], []>} : vector<16x128xf32>, vector<128x384xf32>, vector<16x384xf32> -> vector<16x384xf32>
    %6 = arith.negf %5 : vector<16x384xf32>
    %7 = math.exp %6 : vector<16x384xf32>
    %cst_8 = arith.constant 1.000000e+00 : f32
    %8 = vector.broadcast %cst_8 : f32 to vector<16x384xf32>
    %9 = arith.addf %8, %7 : vector<16x384xf32>
    %10 = arith.divf %8, %9 : vector<16x384xf32>
    %11 = arith.mulf %5, %10 : vector<16x384xf32>
    %12 = arith.mulf %4, %11 : vector<16x384xf32>
    %cst_9 = arith.constant dense<0.000000e+00> : vector<16x128xf32>
    %13 = tpu.matmul %12, %2, %cst_9 {dimension_numbers = #tpu.dot_dimension_numbers<[1], [0], [0], [1], [0, 0, 1, 1], [], []>} : vector<16x384xf32>, vector<384x128xf32>, vector<16x128xf32> -> vector<16x128xf32>
    %c0_10 = arith.constant 0 : index
    %c0_11 = arith.constant 0 : index
    %14 = vector.load %arg6[%c0_10, %c0_11] : memref<16x128xf32, #tpu.memory_space<vmem>>, vector<16x128xf32>
    tpu.vector_store %arg6[%c0_10, %c0_11], %13 {strides = array<i32>} : memref<16x128xf32, #tpu.memory_space<vmem>>, vector<16x128xf32>,
    %c0_12 = arith.constant 0 : index
    %c0_13 = arith.constant 0 : index
    %15 = vector.load %arg2[%c0_12, %c0_13] : memref<16x128xf32, #tpu.memory_space<vmem>>, vector<16x128xf32>
    %cst_14 = arith.constant dense<0.000000e+00> : vector<16x384xf32>
    %16 = tpu.matmul %15, %0, %cst_14 {dimension_numbers = #tpu.dot_dimension_numbers<[1], [0], [0], [1], [0, 0, 1, 1], [], []>} : vector<16x128xf32>, vector<128x384xf32>, vector<16x384xf32> -> vector<16x384xf32>
    %cst_15 = arith.constant dense<0.000000e+00> : vector<16x384xf32>
    %17 = tpu.matmul %15, %1, %cst_15 {dimension_numbers = #tpu.dot_dimension_numbers<[1], [0], [0], [1], [0, 0, 1, 1], [], []>} : vector<16x128xf32>, vector<128x384xf32>, vector<16x384xf32> -> vector<16x384xf32>
    %18 = arith.negf %17 : vector<16x384xf32>
    %19 = math.exp %18 : vector<16x384xf32>
    %cst_16 = arith.constant 1.000000e+00 : f32
    %20 = vector.broadcast %cst_16 : f32 to vector<16x384xf32>
    %21 = arith.addf %20, %19 : vector<16x384xf32>
    %22 = arith.divf %20, %21 : vector<16x384xf32>
    %23 = arith.mulf %17, %22 : vector<16x384xf32>
    %24 = arith.mulf %16, %23 : vector<16x384xf32>
    %cst_17 = arith.constant dense<0.000000e+00> : vector<16x128xf32>
    %25 = tpu.matmul %24, %2, %cst_17 {dimension_numbers = #tpu.dot_dimension_numbers<[1], [0], [0], [1], [0, 0, 1, 1], [], []>} : vector<16x384xf32>, vector<384x128xf32>, vector<16x128xf32> -> vector<16x128xf32>
    %c0_18 = arith.constant 0 : index
    %c0_19 = arith.constant 0 : index
    %26 = vector.load %arg7[%c0_18, %c0_19] : memref<16x128xf32, #tpu.memory_space<vmem>>, vector<16x128xf32>
    tpu.vector_store %arg7[%c0_18, %c0_19], %25 {strides = array<i32>} : memref<16x128xf32, #tpu.memory_space<vmem>>, vector<16x128xf32>,
    return
  }
  func.func @transform_0(%arg0: i32) -> (i32, i32) {
    %c0_i32 = arith.constant 0 : i32
    %c0_i32_0 = arith.constant 0 : i32
    return %arg0, %c0_i32 : i32, i32
  }
  func.func @transform_1(%arg0: i32) -> (i32, i32) {
    %c0_i32 = arith.constant 0 : i32
    %c0_i32_0 = arith.constant 0 : i32
    return %arg0, %c0_i32 : i32, i32
  }
  func.func @transform_2(%arg0: i32) -> (i32, i32) {
    %c0_i32 = arith.constant 0 : i32
    %c0_i32_0 = arith.constant 0 : i32
    %c0_i32_1 = arith.constant 0 : i32
    return %c0_i32, %c0_i32_0 : i32, i32
  }
  func.func @transform_3(%arg0: i32) -> (i32, i32) {
    %c0_i32 = arith.constant 0 : i32
    %c0_i32_0 = arith.constant 0 : i32
    %c0_i32_1 = arith.constant 0 : i32
    return %c0_i32, %c0_i32_0 : i32, i32
  }
  func.func @transform_4(%arg0: i32) -> (i32, i32) {
    %c0_i32 = arith.constant 0 : i32
    %c0_i32_0 = arith.constant 0 : i32
    %c0_i32_1 = arith.constant 0 : i32
    return %c0_i32, %c0_i32_0 : i32, i32
  }
  func.func @transform_5(%arg0: i32) -> (i32, i32) {
    %c0_i32 = arith.constant 0 : i32
    %c0_i32_0 = arith.constant 0 : i32
    return %arg0, %c0_i32 : i32, i32
  }
  func.func @transform_6(%arg0: i32) -> (i32, i32) {
    %c0_i32 = arith.constant 0 : i32
    %c0_i32_0 = arith.constant 0 : i32
    return %arg0, %c0_i32 : i32, i32
  }
}

</mosaic_0001>

<llo_original>
// kernel: tpu_custom_call.1
$region0: #{tpu_custom_call.1}
  #allocation0 [shape = 'u32[]', space=smem, size = 0x4, offset = 0x4, fixed_abs, tag = 'smem constant byte address 0x4 - core index']
  #allocation1 [shape = 'u32[144,128]{1,0:T(1,128)}', space=vmem, size = 0x12000, scoped, tag = 'internal scratch']
  %s0 = inlined_call_operand.hbm [shape: f32[16,128], index: 0, kind: input, shape index: {}]
  %s1 = inlined_call_operand.hbm [shape: f32[16,128], index: 1, kind: input, shape index: {}]
  %s2 = inlined_call_operand.hbm [shape: f32[128,384], index: 2, kind: input, shape index: {}]
  %s3 = inlined_call_operand.hbm [shape: f32[128,384], index: 3, kind: input, shape index: {}]
  %s4 = inlined_call_operand.hbm [shape: f32[384,128], index: 4, kind: input, shape index: {}]
  %s5 = inlined_call_operand.hbm [shape: f32[16,128], index: 5, kind: output, shape index: {0}]
  %s6 = inlined_call_operand.hbm [shape: f32[16,128], index: 6, kind: output, shape index: {1}]
  %7 = xla_tuple %s5, %s6
  %s8 = sld [smem:[#allocation0]]
  $region58: #{tpu_custom_call.1} parent=0
    _
  %s10 = ssub.s32 1, %s8
  %s11 = scalar_select 0, %s10, %s8
  $region1: #{tpu_custom_call.1} parent=0
    #allocation2 [shape = 'u8[8192]{0}', space=vmem, size = 0x2000, scoped, tag = 'input window, operand 0, single buffered']
    #allocation3 [shape = 's32[1]{0}', space=sflag, size = 0x4, scoped, tag = 'scoped memory for tpu_custom_call.1']
    #allocation4 [shape = 's32[1]{0}', space=sflag, size = 0x4, scoped, tag = 'scoped memory for tpu_custom_call.1']
    #allocation5 [shape = 'u8[8192]{0}', space=vmem, size = 0x2000, scoped, tag = 'input window, operand 1, single buffered']
    #allocation6 [shape = 's32[1]{0}', space=sflag, size = 0x4, scoped, tag = 'scoped memory for tpu_custom_call.1']
    #allocation7 [shape = 'u8[196608]{0}', space=vmem, size = 0x30000, scoped, tag = 'input window, operand 2, single buffered']
    #allocation8 [shape = 'u8[196608]{0}', space=vmem, size = 0x30000, scoped, tag = 'input window, operand 3, single buffered']
    #allocation9 [shape = 's32[1]{0}', space=sflag, size = 0x4, scoped, tag = 'scoped memory for tpu_custom_call.1']
    #allocation10 [shape = 'u8[196608]{0}', space=vmem, size = 0x30000, scoped, tag = 'input window, operand 4, single buffered']
    #allocation11 [shape = 'u8[8192]{0}', space=vmem, size = 0x2000, scoped, tag = 'output window, operand 0, single buffered']
    #allocation12 [shape = 'u8[8192]{0}', space=vmem, size = 0x2000, scoped, tag = 'output window, operand 1, single buffered']
    #allocation13 [shape = 's32[1]{0}', space=sflag, size = 0x4, scoped, tag = 'scoped memory for tpu_custom_call.1']
    %12 = vsyncpa [#allocation3], 0
    %13 = vsyncpa [#allocation6], 0
    %14 = vsyncpa [#allocation9], 0
    %15 = vsyncpa [#allocation4], 0
    %16 = vsyncpa [#allocation13], 0
    // Predicated region
    $region2: #{tpu_custom_call.1} parent=1 // pred_check
      _
    $region3: #{tpu_custom_call.1} parent=1 // pred_check_branch
      %18 = sbr.rel (0) target = $region5
    $region4: #{tpu_custom_call.1} parent=1 // pred_region
      %s20 = ssub.s32 256, 256
      %21 = vsyncadd [#allocation3], %s20
      %s22 = sshll.u32 [#allocation2], 4
      %s23 = int_to_ptr.vmem [resolvable:$true] %s22
      %28 = dma.hbm_to_vmem [thread:$0]  %s0, 256, %s23, [#allocation3], 128, 128, 8
    $region5: #{tpu_custom_call.1} parent=1 // pred_fallthru
      _
    // Predicated region
    $region6: #{tpu_custom_call.1} parent=1 // pred_check
      _
    $region7: #{tpu_custom_call.1} parent=1 // pred_check_branch
      %30 = sbr.rel (0) target = $region9
    $region8: #{tpu_custom_call.1} parent=1 // pred_region
      %s32 = ssub.s32 256, 256
      %33 = vsyncadd [#allocation6], %s32
      %s34 = sshll.u32 [#allocation5], 4
      %s35 = int_to_ptr.vmem [resolvable:$true] %s34
      %40 = dma.hbm_to_vmem [thread:$0]  %s1, 256, %s35, [#allocation6], 128, 128, 8
    $region9: #{tpu_custom_call.1} parent=1 // pred_fallthru
      _
    // Predicated region
    $region10: #{tpu_custom_call.1} parent=1 // pred_check
      _
    $region11: #{tpu_custom_call.1} parent=1 // pred_check_branch
      %42 = sbr.rel (0) target = $region13
    $region12: #{tpu_custom_call.1} parent=1 // pred_region
      %s44 = ssub.s32 6144, 6144
      %45 = vsyncadd [#allocation6], %s44
      %s46 = sshll.u32 [#allocation7], 4
      %s47 = int_to_ptr.vmem [resolvable:$true] %s46
      %52 = dma.hbm_to_vmem [thread:$0]  %s2, 6144, %s47, [#allocation6], 384, 384, 24
    $region13: #{tpu_custom_call.1} parent=1 // pred_fallthru
      _
    // Predicated region
    $region14: #{tpu_custom_call.1} parent=1 // pred_check
      _
    $region15: #{tpu_custom_call.1} parent=1 // pred_check_branch
      %54 = sbr.rel (0) target = $region17
    $region16: #{tpu_custom_call.1} parent=1 // pred_region
      %s56 = ssub.s32 6144, 6144
      %57 = vsyncadd [#allocation9], %s56
      %s58 = sshll.u32 [#allocation8], 4
      %s59 = int_to_ptr.vmem [resolvable:$true] %s58
      %64 = dma.hbm_to_vmem [thread:$0]  %s3, 6144, %s59, [#allocation9], 384, 384, 24
    $region17: #{tpu_custom_call.1} parent=1 // pred_fallthru
      _
    // Predicated region
    $region18: #{tpu_custom_call.1} parent=1 // pred_check
      _
    $region19: #{tpu_custom_call.1} parent=1 // pred_check_branch
      %66 = sbr.rel (0) target = $region21
    $region20: #{tpu_custom_call.1} parent=1 // pred_region
      %s68 = ssub.s32 6144, 6144
      %69 = vsyncadd [#allocation9], %s68
      %s70 = sshll.u32 [#allocation10], 4
      %s71 = int_to_ptr.vmem [resolvable:$true] %s70
      %76 = dma.hbm_to_vmem [thread:$0]  %s4, 6144, %s71, [#allocation9], 128, 128, 8
    $region21: #{tpu_custom_call.1} parent=1 // pred_fallthru
      _
    // Predicated region
    $region22: #{tpu_custom_call.1} parent=1 // pred_check
      _
    $region23: #{tpu_custom_call.1} parent=1 // pred_check_branch
      %78 = sbr.rel (0) target = $region25
    $region24: #{tpu_custom_call.1} parent=1 // pred_region
      %79 = dma.done [#allocation3], 256
    $region25: #{tpu_custom_call.1} parent=1 // pred_fallthru
      _
    // Predicated region
    $region26: #{tpu_custom_call.1} parent=1 // pred_check
      _
    $region27: #{tpu_custom_call.1} parent=1 // pred_check_branch
      %81 = sbr.rel (0) target = $region29
    $region28: #{tpu_custom_call.1} parent=1 // pred_region
      %82 = dma.done [#allocation6], 256
    $region29: #{tpu_custom_call.1} parent=1 // pred_fallthru
      _
    // Predicated region
    $region30: #{tpu_custom_call.1} parent=1 // pred_check
      _
    $region31: #{tpu_custom_call.1} parent=1 // pred_check_branch
      %84 = sbr.rel (0) target = $region33
    $region32: #{tpu_custom_call.1} parent=1 // pred_region
      %85 = dma.done [#allocation6], 6144
    $region33: #{tpu_custom_call.1} parent=1 // pred_fallthru
      _
    // Predicated region
    $region34: #{tpu_custom_call.1} parent=1 // pred_check
      _
    $region35: #{tpu_custom_call.1} parent=1 // pred_check_branch
      %87 = sbr.rel (0) target = $region37
    $region36: #{tpu_custom_call.1} parent=1 // pred_region
      %88 = dma.done [#allocation9], 6144
    $region37: #{tpu_custom_call.1} parent=1 // pred_fallthru
      _
    // Predicated region
    $region38: #{tpu_custom_call.1} parent=1 // pred_check
      _
    $region39: #{tpu_custom_call.1} parent=1 // pred_check_branch
      %90 = sbr.rel (0) target = $region41
    $region40: #{tpu_custom_call.1} parent=1 // pred_region
      %91 = dma.done [#allocation9], 6144
    $region41: #{tpu_custom_call.1} parent=1 // pred_fallthru
      _
    %v92 = vld [vmem:[#allocation7] sm:$0xff]
    %v93 = vld [vmem:[#allocation7 + $0x8] sm:$0xff]
    %v94 = vld [vmem:[#allocation7 + $0x10] sm:$0xff]
    %v95 = vld [vmem:[#allocation7 + $0x18] sm:$0xff]
    %v96 = vld [vmem:[#allocation7 + $0x20] sm:$0xff]
    %v97 = vld [vmem:[#allocation7 + $0x28] sm:$0xff]
    %v98 = vld [vmem:[#allocation7 + $0x30] sm:$0xff]
    %v99 = vld [vmem:[#allocation7 + $0x38] sm:$0xff]
    %v100 = vld [vmem:[#allocation7 + $0x40] sm:$0xff]
    %v101 = vld [vmem:[#allocation7 + $0x48] sm:$0xff]
    %v102 = vld [vmem:[#allocation7 + $0x50] sm:$0xff]
    %v103 = vld [vmem:[#allocation7 + $0x58] sm:$0xff]
    %v104 = vld [vmem:[#allocation7 + $0x60] sm:$0xff]
    %v105 = vld [vmem:[#allocation7 + $0x68] sm:$0xff]
    %v106 = vld [vmem:[#allocation7 + $0x70] sm:$0xff]
    %v107 = vld [vmem:[#allocation7 + $0x78] sm:$0xff]
    %v108 = vld [vmem:[#allocation7 + $0x80] sm:$0xff]
    %v109 = vld [vmem:[#allocation7 + $0x88] sm:$0xff]
    %v110 = vld [vmem:[#allocation7 + $0x90] sm:$0xff]
    %v111 = vld [vmem:[#allocation7 + $0x98] sm:$0xff]
    %v112 = vld [vmem:[#allocation7 + $0xa0] sm:$0xff]
    %v113 = vld [vmem:[#allocation7 + $0xa8] sm:$0xff]
    %v114 = vld [vmem:[#allocation7 + $0xb0] sm:$0xff]
    %v115 = vld [vmem:[#allocation7 + $0xb8] sm:$0xff]
    %v116 = vld [vmem:[#allocation7 + $0xc0] sm:$0xff]
    %v117 = vld [vmem:[#allocation7 + $0xc8] sm:$0xff]
    %v118 = vld [vmem:[#allocation7 + $0xd0] sm:$0xff]
    %v119 = vld [vmem:[#allocation7 + $0xd8] sm:$0xff]
    %v120 = vld [vmem:[#allocation7 + $0xe0] sm:$0xff]
    %v121 = vld [vmem:[#allocation7 + $0xe8] sm:$0xff]
    %v122 = vld [vmem:[#allocation7 + $0xf0] sm:$0xff]
    %v123 = vld [vmem:[#allocation7 + $0xf8] sm:$0xff]
    %v124 = vld [vmem:[#allocation7 + $0x100] sm:$0xff]
    %v125 = vld [vmem:[#allocation7 + $0x108] sm:$0xff]
    %v126 = vld [vmem:[#allocation7 + $0x110] sm:$0xff]
    %v127 = vld [vmem:[#allocation7 + $0x118] sm:$0xff]
    %v128 = vld [vmem:[#allocation7 + $0x120] sm:$0xff]
    %v129 = vld [vmem:[#allocation7 + $0x128] sm:$0xff]
    %v130 = vld [vmem:[#allocation7 + $0x130] sm:$0xff]
    %v131 = vld [vmem:[#allocation7 + $0x138] sm:$0xff]
    %v132 = vld [vmem:[#allocation7 + $0x140] sm:$0xff]
    %v133 = vld [vmem:[#allocation7 + $0x148] sm:$0xff]
    %v134 = vld [vmem:[#allocation7 + $0x150] sm:$0xff]
    %v135 = vld [vmem:[#allocation7 + $0x158] sm:$0xff]
    %v136 = vld [vmem:[#allocation7 + $0x160] sm:$0xff]
    %v137 = vld [vmem:[#allocation7 + $0x168] sm:$0xff]
    %v138 = vld [vmem:[#allocation7 + $0x170] sm:$0xff]
    %v139 = vld [vmem:[#allocation7 + $0x178] sm:$0xff]
    %v140 = vld [vmem:[#allocation8] sm:$0xff]
    %v141 = vld [vmem:[#allocation8 + $0x8] sm:$0xff]
    %v142 = vld [vmem:[#allocation8 + $0x10] sm:$0xff]
    %v143 = vld [vmem:[#allocation8 + $0x18] sm:$0xff]
    %v144 = vld [vmem:[#allocation8 + $0x20] sm:$0xff]
    %v145 = vld [vmem:[#allocation8 + $0x28] sm:$0xff]
    %v146 = vld [vmem:[#allocation8 + $0x30] sm:$0xff]
    %v147 = vld [vmem:[#allocation8 + $0x38] sm:$0xff]
    %v148 = vld [vmem:[#allocation8 + $0x40] sm:$0xff]
    %v149 = vld [vmem:[#allocation8 + $0x48] sm:$0xff]
    %v150 = vld [vmem:[#allocation8 + $0x50] sm:$0xff]
    %v151 = vld [vmem:[#allocation8 + $0x58] sm:$0xff]
    %v152 = vld [vmem:[#allocation8 + $0x60] sm:$0xff]
    %v153 = vld [vmem:[#allocation8 + $0x68] sm:$0xff]
    %v154 = vld [vmem:[#allocation8 + $0x70] sm:$0xff]
    %v155 = vld [vmem:[#allocation8 + $0x78] sm:$0xff]
    %v156 = vld [vmem:[#allocation8 + $0x80] sm:$0xff]
    %v157 = vld [vmem:[#allocation8 + $0x88] sm:$0xff]
    %v158 = vld [vmem:[#allocation8 + $0x90] sm:$0xff]
    %v159 = vld [vmem:[#allocation8 + $0x98] sm:$0xff]
    %v160 = vld [vmem:[#allocation8 + $0xa0] sm:$0xff]
    %v161 = vld [vmem:[#allocation8 + $0xa8] sm:$0xff]
    %v162 = vld [vmem:[#allocation8 + $0xb0] sm:$0xff]
    %v163 = vld [vmem:[#allocation8 + $0xb8] sm:$0xff]
    %v164 = vld [vmem:[#allocation8 + $0xc0] sm:$0xff]
    %v165 = vld [vmem:[#allocation8 + $0xc8] sm:$0xff]
    %v166 = vld [vmem:[#allocation8 + $0xd0] sm:$0xff]
    %v167 = vld [vmem:[#allocation8 + $0xd8] sm:$0xff]
    %v168 = vld [vmem:[#allocation8 + $0xe0] sm:$0xff]
    %v169 = vld [vmem:[#allocation8 + $0xe8] sm:$0xff]
    %v170 = vld [vmem:[#allocation8 + $0xf0] sm:$0xff]
    %v171 = vld [vmem:[#allocation8 + $0xf8] sm:$0xff]
    %v172 = vld [vmem:[#allocation8 + $0x100] sm:$0xff]
    %v173 = vld [vmem:[#allocation8 + $0x108] sm:$0xff]
    %v174 = vld [vmem:[#allocation8 + $0x110] sm:$0xff]
    %v175 = vld [vmem:[#allocation8 + $0x118] sm:$0xff]
    %v176 = vld [vmem:[#allocation8 + $0x120] sm:$0xff]
    %v177 = vld [vmem:[#allocation8 + $0x128] sm:$0xff]
    %v178 = vld [vmem:[#allocation8 + $0x130] sm:$0xff]
    %v179 = vld [vmem:[#allocation8 + $0x138] sm:$0xff]
    %v180 = vld [vmem:[#allocation8 + $0x140] sm:$0xff]
    %v181 = vld [vmem:[#allocation8 + $0x148] sm:$0xff]
    %v182 = vld [vmem:[#allocation8 + $0x150] sm:$0xff]
    %v183 = vld [vmem:[#allocation8 + $0x158] sm:$0xff]
    %v184 = vld [vmem:[#allocation8 + $0x160] sm:$0xff]
    %v185 = vld [vmem:[#allocation8 + $0x168] sm:$0xff]
    %v186 = vld [vmem:[#allocation8 + $0x170] sm:$0xff]
    %v187 = vld [vmem:[#allocation8 + $0x178] sm:$0xff]
    %v188 = vld [vmem:[#allocation10] sm:$0xff]
    %v189 = vld [vmem:[#allocation10 + $0x8] sm:$0xff]
    %v190 = vld [vmem:[#allocation10 + $0x10] sm:$0xff]
    %v191 = vld [vmem:[#allocation10 + $0x18] sm:$0xff]
    %v192 = vld [vmem:[#allocation10 + $0x20] sm:$0xff]
    %v193 = vld [vmem:[#allocation10 + $0x28] sm:$0xff]
    %v194 = vld [vmem:[#allocation10 + $0x30] sm:$0xff]
    %v195 = vld [vmem:[#allocation10 + $0x38] sm:$0xff]
    %v196 = vld [vmem:[#allocation10 + $0x40] sm:$0xff]
    %v197 = vld [vmem:[#allocation10 + $0x48] sm:$0xff]
    %v198 = vld [vmem:[#allocation10 + $0x50] sm:$0xff]
    %v199 = vld [vmem:[#allocation10 + $0x58] sm:$0xff]
    %v200 = vld [vmem:[#allocation10 + $0x60] sm:$0xff]
    %v201 = vld [vmem:[#allocation10 + $0x68] sm:$0xff]
    %v202 = vld [vmem:[#allocation10 + $0x70] sm:$0xff]
    %v203 = vld [vmem:[#allocation10 + $0x78] sm:$0xff]
    %v204 = vld [vmem:[#allocation10 + $0x80] sm:$0xff]
    %v205 = vld [vmem:[#allocation10 + $0x88] sm:$0xff]
    %v206 = vld [vmem:[#allocation10 + $0x90] sm:$0xff]
    %v207 = vld [vmem:[#allocation10 + $0x98] sm:$0xff]
    %v208 = vld [vmem:[#allocation10 + $0xa0] sm:$0xff]
    %v209 = vld [vmem:[#allocation10 + $0xa8] sm:$0xff]
    %v210 = vld [vmem:[#allocation10 + $0xb0] sm:$0xff]
    %v211 = vld [vmem:[#allocation10 + $0xb8] sm:$0xff]
    %v212 = vld [vmem:[#allocation10 + $0xc0] sm:$0xff]
    %v213 = vld [vmem:[#allocation10 + $0xc8] sm:$0xff]
    %v214 = vld [vmem:[#allocation10 + $0xd0] sm:$0xff]
    %v215 = vld [vmem:[#allocation10 + $0xd8] sm:$0xff]
    %v216 = vld [vmem:[#allocation10 + $0xe0] sm:$0xff]
    %v217 = vld [vmem:[#allocation10 + $0xe8] sm:$0xff]
    %v218 = vld [vmem:[#allocation10 + $0xf0] sm:$0xff]
    %v219 = vld [vmem:[#allocation10 + $0xf8] sm:$0xff]
    %v220 = vld [vmem:[#allocation10 + $0x100] sm:$0xff]
    %v221 = vld [vmem:[#allocation10 + $0x108] sm:$0xff]
    %v222 = vld [vmem:[#allocation10 + $0x110] sm:$0xff]
    %v223 = vld [vmem:[#allocation10 + $0x118] sm:$0xff]
    %v224 = vld [vmem:[#allocation10 + $0x120] sm:$0xff]
    %v225 = vld [vmem:[#allocation10 + $0x128] sm:$0xff]
    %v226 = vld [vmem:[#allocation10 + $0x130] sm:$0xff]
    %v227 = vld [vmem:[#allocation10 + $0x138] sm:$0xff]
    %v228 = vld [vmem:[#allocation10 + $0x140] sm:$0xff]
    %v229 = vld [vmem:[#allocation10 + $0x148] sm:$0xff]
    %v230 = vld [vmem:[#allocation10 + $0x150] sm:$0xff]
    %v231 = vld [vmem:[#allocation10 + $0x158] sm:$0xff]
    %v232 = vld [vmem:[#allocation10 + $0x160] sm:$0xff]
    %v233 = vld [vmem:[#allocation10 + $0x168] sm:$0xff]
    %v234 = vld [vmem:[#allocation10 + $0x170] sm:$0xff]
    %v235 = vld [vmem:[#allocation10 + $0x178] sm:$0xff]
    %v236 = vld [vmem:[#allocation2] sm:$0xff]
    %v237 = vld [vmem:[#allocation2 + $0x8] sm:$0xff]
    %238 = vmatprep.subr.mxu0 %v93
    %239 = vmatpush1.msra.mxu0 %v92
    %240 = vmatprep.subr.mxu0 %v96
    %241 = vmatpush1.msra.mxu0 %v95
    %242 = vmatprep.subr.mxu0 %v99
    %243 = vmatpush1.msra.mxu0 %v98
    %244 = vmatprep.subr.mxu0 %v102
    %245 = vmatpush1.msra.mxu0 %v101
    %246 = vmatprep.subr.mxu0 %v105
    %247 = vmatpush1.msra.mxu0 %v104
    %248 = vmatprep.subr.mxu0 %v108
    %249 = vmatpush1.msra.mxu0 %v107
    %250 = vmatprep.subr.mxu0 %v111
    %251 = vmatpush1.msra.mxu0 %v110
    %252 = vmatprep.subr.mxu0 %v114
    %253 = vmatpush1.msra.mxu0 %v113
    %254 = vmatprep.subr.mxu0 %v117
    %255 = vmatpush1.msra.mxu0 %v116
    %256 = vmatprep.subr.mxu0 %v120
    %257 = vmatpush1.msra.mxu0 %v119
    %258 = vmatprep.subr.mxu0 %v123
    %259 = vmatpush1.msra.mxu0 %v122
    %260 = vmatprep.subr.mxu0 %v126
    %261 = vmatpush1.msra.mxu0 %v125
    %262 = vmatprep.subr.mxu0 %v129
    %263 = vmatpush1.msra.mxu0 %v128
    %264 = vmatprep.subr.mxu0 %v132
    %265 = vmatpush1.msra.mxu0 %v131
    %266 = vmatprep.subr.mxu0 %v135
    %267 = vmatpush1.msra.mxu0 %v134
    %268 = vmatprep.subr.mxu0 %v138
    %269 = vmatpush1.msra.mxu0 %v137
    %270 = vmatprep.subr.mxu0 0.0
    %271 = vmatpush1.msra.mxu0 0.0
    %272 = vmatprep.subr.mxu0 0.0
    %273 = vmatpush1.msra.mxu0 0.0
    %274 = vmatprep.subr.mxu0 0.0
    %275 = vmatpush1.msra.mxu0 0.0
    %276 = vmatprep.subr.mxu0 0.0
    %277 = vmatpush1.msra.mxu0 0.0
    %278 = vmatprep.subr.mxu0 0.0
    %279 = vmatpush1.msra.mxu0 0.0
    %280 = vmatprep.subr.mxu0 0.0
    %281 = vmatpush1.msra.mxu0 0.0
    %282 = vmatprep.subr.mxu0 0.0
    %283 = vmatpush1.msra.mxu0 0.0
    %284 = vmatprep.subr.mxu0 0.0
    %285 = vmatpush1.msra.mxu0 0.0
    %286 = vmatprep.subr.mxu0 0.0
    %287 = vmatpush1.msra.mxu0 0.0
    %288 = vmatprep.subr.mxu0 0.0
    %289 = vmatpush1.msra.mxu0 0.0
    %290 = vmatprep.subr.mxu0 0.0
    %291 = vmatpush1.msra.mxu0 0.0
    %292 = vmatprep.subr.mxu0 0.0
    %293 = vmatpush1.msra.mxu0 0.0
    %294 = vmatprep.subr.mxu0 0.0
    %295 = vmatpush1.msra.mxu0 0.0
    %296 = vmatprep.subr.mxu0 0.0
    %297 = vmatpush1.msra.mxu0 0.0
    %298 = vmatprep.subr.mxu0 0.0
    %299 = vmatpush1.msra.mxu0 0.0
    %300 = vmatprep.subr.mxu0 0.0
    %301 = vmatpush1.msra.mxu0 0.0
    %302 = vmatprep.mubr.f32.mxu0 0.0
    %303 = vmatmul.mubr.f32.gmra.mrb[0].mxu0 %v236
    %v304 = vpop.f32.mrb[0].mxu0
    %v305 = vadd.f32 0.0, %v304
    %v306 = vpop.f32.mrb[0].mxu0
    %v307 = vadd.f32 0.0, %v306
    %308 = vmatprep.mubr.f32.mxu0 0.0
    %309 = vmatmul.mubr.f32.gmra.mrb[0].mxu0 %v237
    %v310 = vpop.f32.mrb[0].mxu0
    %v311 = vadd.f32 0.0, %v310
    %v312 = vpop.f32.mrb[0].mxu0
    %v313 = vadd.f32 0.0, %v312
    %314 = vdwg.mxu0
    %315 = vmatprep.subr.mxu0 0.0
    %316 = vmatpush1.msra.mxu0 %v94
    %317 = vmatprep.subr.mxu0 0.0
    %318 = vmatpush1.msra.mxu0 %v97
    %319 = vmatprep.subr.mxu0 0.0
    %320 = vmatpush1.msra.mxu0 %v100
    %321 = vmatprep.subr.mxu0 0.0
    %322 = vmatpush1.msra.mxu0 %v103
    %323 = vmatprep.subr.mxu0 0.0
    %324 = vmatpush1.msra.mxu0 %v106
    %325 = vmatprep.subr.mxu0 0.0
    %326 = vmatpush1.msra.mxu0 %v109
    %327 = vmatprep.subr.mxu0 0.0
    %328 = vmatpush1.msra.mxu0 %v112
    %329 = vmatprep.subr.mxu0 0.0
    %330 = vmatpush1.msra.mxu0 %v115
    %331 = vmatprep.subr.mxu0 0.0
    %332 = vmatpush1.msra.mxu0 %v118
    %333 = vmatprep.subr.mxu0 0.0
    %334 = vmatpush1.msra.mxu0 %v121
    %335 = vmatprep.subr.mxu0 0.0
    %336 = vmatpush1.msra.mxu0 %v124
    %337 = vmatprep.subr.mxu0 0.0
    %338 = vmatpush1.msra.mxu0 %v127
    %339 = vmatprep.subr.mxu0 0.0
    %340 = vmatpush1.msra.mxu0 %v130
    %341 = vmatprep.subr.mxu0 0.0
    %342 = vmatpush1.msra.mxu0 %v133
    %343 = vmatprep.subr.mxu0 0.0
    %344 = vmatpush1.msra.mxu0 %v136
    %345 = vmatprep.subr.mxu0 0.0
    %346 = vmatpush1.msra.mxu0 %v139
    %347 = vmatprep.subr.mxu0 0.0
    %348 = vmatpush1.msra.mxu0 0.0
    %349 = vmatprep.subr.mxu0 0.0
    %350 = vmatpush1.msra.mxu0 0.0
    %351 = vmatprep.subr.mxu0 0.0
    %352 = vmatpush1.msra.mxu0 0.0
    %353 = vmatprep.subr.mxu0 0.0
    %354 = vmatpush1.msra.mxu0 0.0
    %355 = vmatprep.subr.mxu0 0.0
    %356 = vmatpush1.msra.mxu0 0.0
    %357 = vmatprep.subr.mxu0 0.0
    %358 = vmatpush1.msra.mxu0 0.0
    %359 = vmatprep.subr.mxu0 0.0
    %360 = vmatpush1.msra.mxu0 0.0
    %361 = vmatprep.subr.mxu0 0.0
    %362 = vmatpush1.msra.mxu0 0.0
    %363 = vmatprep.subr.mxu0 0.0
    %364 = vmatpush1.msra.mxu0 0.0
    %365 = vmatprep.subr.mxu0 0.0
    %366 = vmatpush1.msra.mxu0 0.0
    %367 = vmatprep.subr.mxu0 0.0
    %368 = vmatpush1.msra.mxu0 0.0
    %369 = vmatprep.subr.mxu0 0.0
    %370 = vmatpush1.msra.mxu0 0.0
    %371 = vmatprep.subr.mxu0 0.0
    %372 = vmatpush1.msra.mxu0 0.0
    %373 = vmatprep.subr.mxu0 0.0
    %374 = vmatpush1.msra.mxu0 0.0
    %375 = vmatprep.subr.mxu0 0.0
    %376 = vmatpush1.msra.mxu0 0.0
    %377 = vmatprep.subr.mxu0 0.0
    %378 = vmatpush1.msra.mxu0 0.0
    %379 = vmatprep.mubr.f32.mxu0 0.0
    %380 = vmatmul.mubr.f32.gmra.mrb[0].mxu0 %v236
    %v381 = vpop.f32.mrb[0].mxu0
    %v382 = vadd.f32 0.0, %v381
    %v383 = vpop.f32.mrb[0].mxu0
    %384 = vmatprep.mubr.f32.mxu0 0.0
    %385 = vmatmul.mubr.f32.gmra.mrb[0].mxu0 %v237
    %v386 = vpop.f32.mrb[0].mxu0
    %v387 = vadd.f32 0.0, %v386
    %v388 = vpop.f32.mrb[0].mxu0
    %389 = vdwg.mxu0
    %390 = vmatprep.subr.mxu0 %v141
    %391 = vmatpush1.msra.mxu0 %v140
    %392 = vmatprep.subr.mxu0 %v144
    %393 = vmatpush1.msra.mxu0 %v143
    %394 = vmatprep.subr.mxu0 %v147
    %395 = vmatpush1.msra.mxu0 %v146
    %396 = vmatprep.subr.mxu0 %v150
    %397 = vmatpush1.msra.mxu0 %v149
    %398 = vmatprep.subr.mxu0 %v153
    %399 = vmatpush1.msra.mxu0 %v152
    %400 = vmatprep.subr.mxu0 %v156
    %401 = vmatpush1.msra.mxu0 %v155
    %402 = vmatprep.subr.mxu0 %v159
    %403 = vmatpush1.msra.mxu0 %v158
    %404 = vmatprep.subr.mxu0 %v162
    %405 = vmatpush1.msra.mxu0 %v161
    %406 = vmatprep.subr.mxu0 %v165
    %407 = vmatpush1.msra.mxu0 %v164
    %408 = vmatprep.subr.mxu0 %v168
    %409 = vmatpush1.msra.mxu0 %v167
    %410 = vmatprep.subr.mxu0 %v171
    %411 = vmatpush1.msra.mxu0 %v170
    %412 = vmatprep.subr.mxu0 %v174
    %413 = vmatpush1.msra.mxu0 %v173
    %414 = vmatprep.subr.mxu0 %v177
    %415 = vmatpush1.msra.mxu0 %v176
    %416 = vmatprep.subr.mxu0 %v180
    %417 = vmatpush1.msra.mxu0 %v179
    %418 = vmatprep.subr.mxu0 %v183
    %419 = vmatpush1.msra.mxu0 %v182
    %420 = vmatprep.subr.mxu0 %v186
    %421 = vmatpush1.msra.mxu0 %v185
    %422 = vmatprep.subr.mxu0 0.0
    %423 = vmatpush1.msra.mxu0 0.0
    %424 = vmatprep.subr.mxu0 0.0
    %425 = vmatpush1.msra.mxu0 0.0
    %426 = vmatprep.subr.mxu0 0.0
    %427 = vmatpush1.msra.mxu0 0.0
    %428 = vmatprep.subr.mxu0 0.0
    %429 = vmatpush1.msra.mxu0 0.0
    %430 = vmatprep.subr.mxu0 0.0
    %431 = vmatpush1.msra.mxu0 0.0
    %432 = vmatprep.subr.mxu0 0.0
    %433 = vmatpush1.msra.mxu0 0.0
    %434 = vmatprep.subr.mxu0 0.0
    %435 = vmatpush1.msra.mxu0 0.0
    %436 = vmatprep.subr.mxu0 0.0
    %437 = vmatpush1.msra.mxu0 0.0
    %438 = vmatprep.subr.mxu0 0.0
    %439 = vmatpush1.msra.mxu0 0.0
    %440 = vmatprep.subr.mxu0 0.0
    %441 = vmatpush1.msra.mxu0 0.0
    %442 = vmatprep.subr.mxu0 0.0
    %443 = vmatpush1.msra.mxu0 0.0
    %444 = vmatprep.subr.mxu0 0.0
    %445 = vmatpush1.msra.mxu0 0.0
    %446 = vmatprep.subr.mxu0 0.0
    %447 = vmatpush1.msra.mxu0 0.0
    %448 = vmatprep.subr.mxu0 0.0
    %449 = vmatpush1.msra.mxu0 0.0
    %450 = vmatprep.subr.mxu0 0.0
    %451 = vmatpush1.msra.mxu0 0.0
    %452 = vmatprep.subr.mxu0 0.0
    %453 = vmatpush1.msra.mxu0 0.0
    %454 = vmatprep.mubr.f32.mxu0 0.0
    %455 = vmatmul.mubr.f32.gmra.mrb[0].mxu0 %v236
    %v456 = vpop.f32.mrb[0].mxu0
    %v457 = vadd.f32 0.0, %v456
    %v458 = vpop.f32.mrb[0].mxu0
    %v459 = vadd.f32 0.0, %v458
    %460 = vmatprep.mubr.f32.mxu0 0.0
    %461 = vmatmul.mubr.f32.gmra.mrb[0].mxu0 %v237
    %v462 = vpop.f32.mrb[0].mxu0
    %v463 = vadd.f32 0.0, %v462
    %v464 = vpop.f32.mrb[0].mxu0
    %v465 = vadd.f32 0.0, %v464
    %466 = vdwg.mxu0
    %467 = vmatprep.subr.mxu0 0.0
    %468 = vmatpush1.msra.mxu0 %v142
    %469 = vmatprep.subr.mxu0 0.0
    %470 = vmatpush1.msra.mxu0 %v145
    %471 = vmatprep.subr.mxu0 0.0
    %472 = vmatpush1.msra.mxu0 %v148
    %473 = vmatprep.subr.mxu0 0.0
    %474 = vmatpush1.msra.mxu0 %v151
    %475 = vmatprep.subr.mxu0 0.0
    %476 = vmatpush1.msra.mxu0 %v154
    %477 = vmatprep.subr.mxu0 0.0
    %478 = vmatpush1.msra.mxu0 %v157
    %479 = vmatprep.subr.mxu0 0.0
    %480 = vmatpush1.msra.mxu0 %v160
    %481 = vmatprep.subr.mxu0 0.0
    %482 = vmatpush1.msra.mxu0 %v163
    %483 = vmatprep.subr.mxu0 0.0
    %484 = vmatpush1.msra.mxu0 %v166
    %485 = vmatprep.subr.mxu0 0.0
    %486 = vmatpush1.msra.mxu0 %v169
    %487 = vmatprep.subr.mxu0 0.0
    %488 = vmatpush1.msra.mxu0 %v172
    %489 = vmatprep.subr.mxu0 0.0
    %490 = vmatpush1.msra.mxu0 %v175
    %491 = vmatprep.subr.mxu0 0.0
    %492 = vmatpush1.msra.mxu0 %v178
    %493 = vmatprep.subr.mxu0 0.0
    %494 = vmatpush1.msra.mxu0 %v181
    %495 = vmatprep.subr.mxu0 0.0
    %496 = vmatpush1.msra.mxu0 %v184
    %497 = vmatprep.subr.mxu0 0.0
    %498 = vmatpush1.msra.mxu0 %v187
    %499 = vmatprep.subr.mxu0 0.0
    %500 = vmatpush1.msra.mxu0 0.0
    %501 = vmatprep.subr.mxu0 0.0
    %502 = vmatpush1.msra.mxu0 0.0
    %503 = vmatprep.subr.mxu0 0.0
    %504 = vmatpush1.msra.mxu0 0.0
    %505 = vmatprep.subr.mxu0 0.0
    %506 = vmatpush1.msra.mxu0 0.0
    %507 = vmatprep.subr.mxu0 0.0
    %508 = vmatpush1.msra.mxu0 0.0
    %509 = vmatprep.subr.mxu0 0.0
    %510 = vmatpush1.msra.mxu0 0.0
    %511 = vmatprep.subr.mxu0 0.0
    %512 = vmatpush1.msra.mxu0 0.0
    %513 = vmatprep.subr.mxu0 0.0
    %514 = vmatpush1.msra.mxu0 0.0
    %515 = vmatprep.subr.mxu0 0.0
    %516 = vmatpush1.msra.mxu0 0.0
    %517 = vmatprep.subr.mxu0 0.0
    %518 = vmatpush1.msra.mxu0 0.0
    %519 = vmatprep.subr.mxu0 0.0
    %520 = vmatpush1.msra.mxu0 0.0
    %521 = vmatprep.subr.mxu0 0.0
    %522 = vmatpush1.msra.mxu0 0.0
    %523 = vmatprep.subr.mxu0 0.0
    %524 = vmatpush1.msra.mxu0 0.0
    %525 = vmatprep.subr.mxu0 0.0
    %526 = vmatpush1.msra.mxu0 0.0
    %527 = vmatprep.subr.mxu0 0.0
    %528 = vmatpush1.msra.mxu0 0.0
    %529 = vmatprep.subr.mxu0 0.0
    %530 = vmatpush1.msra.mxu0 0.0
    %531 = vmatprep.mubr.f32.mxu0 0.0
    %532 = vmatmul.mubr.f32.gmra.mrb[0].mxu0 %v236
    %v533 = vpop.f32.mrb[0].mxu0
    %v534 = vadd.f32 0.0, %v533
    %v535 = vpop.f32.mrb[0].mxu0
    %536 = vmatprep.mubr.f32.mxu0 0.0
    %537 = vmatmul.mubr.f32.gmra.mrb[0].mxu0 %v237
    %v538 = vpop.f32.mrb[0].mxu0
    %v539 = vadd.f32 0.0, %v538
    %v540 = vpop.f32.mrb[0].mxu0
    %541 = vdwg.mxu0
    %v542 = vxor.u32 %v457, 2147483648
    %v543 = vxor.u32 %v459, 2147483648
    %v544 = vxor.u32 %v534, 2147483648
    %v545 = vxor.u32 %v463, 2147483648
    %v546 = vxor.u32 %v465, 2147483648
    %v547 = vxor.u32 %v539, 2147483648
    %v548 = vmul.f32 %v542, 1.442695
    %v549 = vpow.pop %v548
    %v550 = vmul.f32 %v543, 1.442695
    %v551 = vpow.pop %v550
    %v552 = vmul.f32 %v544, 1.442695
    %v553 = vpow.pop %v552
    %v554 = vmul.f32 %v545, 1.442695
    %v555 = vpow.pop %v554
    %v556 = vmul.f32 %v546, 1.442695
    %v557 = vpow.pop %v556
    %v558 = vmul.f32 %v547, 1.442695
    %v559 = vpow.pop %v558
    %v560 = vadd.f32 %v549, 1.0
    %v561 = vadd.f32 %v551, 1.0
    %v562 = vadd.f32 %v553, 1.0
    %v563 = vadd.f32 %v555, 1.0
    %v564 = vadd.f32 %v557, 1.0
    %v565 = vadd.f32 %v559, 1.0
    %v566 = vrcp.pop %v560
    %v567 = vmul.f32 1.0, %v566
    %v568 = vrcp.pop %v561
    %v569 = vmul.f32 1.0, %v568
    %v570 = vrcp.pop %v562
    %v571 = vmul.f32 1.0, %v570
    %v572 = vrcp.pop %v563
    %v573 = vmul.f32 1.0, %v572
    %v574 = vrcp.pop %v564
    %v575 = vmul.f32 1.0, %v574
    %v576 = vrcp.pop %v565
    %v577 = vmul.f32 1.0, %v576
    %v578 = vmul.f32 %v457, %v567
    %v579 = vmul.f32 %v459, %v569
    %v580 = vmul.f32 %v534, %v571
    %v581 = vmul.f32 %v463, %v573
    %v582 = vmul.f32 %v465, %v575
    %v583 = vmul.f32 %v539, %v577
    %v584 = vmul.f32 %v305, %v578
    %v585 = vmul.f32 %v307, %v579
    %v586 = vmul.f32 %v382, %v580
    %v587 = vmul.f32 %v311, %v581
    %v588 = vmul.f32 %v313, %v582
    %v589 = vmul.f32 %v387, %v583
    %590 = vmatprep.subr.mxu0 0.0
    %591 = vmatpush1.msra.mxu0 %v188
    %592 = vmatprep.subr.mxu0 0.0
    %593 = vmatpush1.msra.mxu0 %v189
    %594 = vmatprep.subr.mxu0 0.0
    %595 = vmatpush1.msra.mxu0 %v190
    %596 = vmatprep.subr.mxu0 0.0
    %597 = vmatpush1.msra.mxu0 %v191
    %598 = vmatprep.subr.mxu0 0.0
    %599 = vmatpush1.msra.mxu0 %v192
    %600 = vmatprep.subr.mxu0 0.0
    %601 = vmatpush1.msra.mxu0 %v193
    %602 = vmatprep.subr.mxu0 0.0
    %603 = vmatpush1.msra.mxu0 %v194
    %604 = vmatprep.subr.mxu0 0.0
    %605 = vmatpush1.msra.mxu0 %v195
    %606 = vmatprep.subr.mxu0 0.0
    %607 = vmatpush1.msra.mxu0 %v196
    %608 = vmatprep.subr.mxu0 0.0
    %609 = vmatpush1.msra.mxu0 %v197
    %610 = vmatprep.subr.mxu0 0.0
    %611 = vmatpush1.msra.mxu0 %v198
    %612 = vmatprep.subr.mxu0 0.0
    %613 = vmatpush1.msra.mxu0 %v199
    %614 = vmatprep.subr.mxu0 0.0
    %615 = vmatpush1.msra.mxu0 %v200
    %616 = vmatprep.subr.mxu0 0.0
    %617 = vmatpush1.msra.mxu0 %v201
    %618 = vmatprep.subr.mxu0 0.0
    %619 = vmatpush1.msra.mxu0 %v202
    %620 = vmatprep.subr.mxu0 0.0
    %621 = vmatpush1.msra.mxu0 %v203
    %622 = vmatprep.subr.mxu0 0.0
    %623 = vmatpush1.msra.mxu0 %v204
    %624 = vmatprep.subr.mxu0 0.0
    %625 = vmatpush1.msra.mxu0 %v205
    %626 = vmatprep.subr.mxu0 0.0
    %627 = vmatpush1.msra.mxu0 %v206
    %628 = vmatprep.subr.mxu0 0.0
    %629 = vmatpush1.msra.mxu0 %v207
    %630 = vmatprep.subr.mxu0 0.0
    %631 = vmatpush1.msra.mxu0 %v208
    %632 = vmatprep.subr.mxu0 0.0
    %633 = vmatpush1.msra.mxu0 %v209
    %634 = vmatprep.subr.mxu0 0.0
    %635 = vmatpush1.msra.mxu0 %v210
    %636 = vmatprep.subr.mxu0 0.0
    %637 = vmatpush1.msra.mxu0 %v211
    %638 = vmatprep.subr.mxu0 0.0
    %639 = vmatpush1.msra.mxu0 %v212
    %640 = vmatprep.subr.mxu0 0.0
    %641 = vmatpush1.msra.mxu0 %v213
    %642 = vmatprep.subr.mxu0 0.0
    %643 = vmatpush1.msra.mxu0 %v214
    %644 = vmatprep.subr.mxu0 0.0
    %645 = vmatpush1.msra.mxu0 %v215
    %646 = vmatprep.subr.mxu0 0.0
    %647 = vmatpush1.msra.mxu0 %v216
    %648 = vmatprep.subr.mxu0 0.0
    %649 = vmatpush1.msra.mxu0 %v217
    %650 = vmatprep.subr.mxu0 0.0
    %651 = vmatpush1.msra.mxu0 %v218
    %652 = vmatprep.subr.mxu0 0.0
    %653 = vmatpush1.msra.mxu0 %v219
    %654 = vmatprep.mubr.f32.mxu0 %v585
    %655 = vmatmul.mubr.f32.gmra.mrb[0].mxu0 %v584
    %v656 = vpop.f32.mrb[0].mxu0
    %v657 = vadd.f32 0.0, %v656
    %v658 = vpop.f32.mrb[0].mxu0
    %659 = vmatprep.mubr.f32.mxu0 %v588
    %660 = vmatmul.mubr.f32.gmra.mrb[0].mxu0 %v587
    %v661 = vpop.f32.mrb[0].mxu0
    %v662 = vadd.f32 0.0, %v661
    %v663 = vpop.f32.mrb[0].mxu0
    %664 = vdwg.mxu0
    %665 = vmatprep.subr.mxu0 0.0
    %666 = vmatpush1.msra.mxu0 %v220
    %667 = vmatprep.subr.mxu0 0.0
    %668 = vmatpush1.msra.mxu0 %v221
    %669 = vmatprep.subr.mxu0 0.0
    %670 = vmatpush1.msra.mxu0 %v222
    %671 = vmatprep.subr.mxu0 0.0
    %672 = vmatpush1.msra.mxu0 %v223
    %673 = vmatprep.subr.mxu0 0.0
    %674 = vmatpush1.msra.mxu0 %v224
    %675 = vmatprep.subr.mxu0 0.0
    %676 = vmatpush1.msra.mxu0 %v225
    %677 = vmatprep.subr.mxu0 0.0
    %678 = vmatpush1.msra.mxu0 %v226
    %679 = vmatprep.subr.mxu0 0.0
    %680 = vmatpush1.msra.mxu0 %v227
    %681 = vmatprep.subr.mxu0 0.0
    %682 = vmatpush1.msra.mxu0 %v228
    %683 = vmatprep.subr.mxu0 0.0
    %684 = vmatpush1.msra.mxu0 %v229
    %685 = vmatprep.subr.mxu0 0.0
    %686 = vmatpush1.msra.mxu0 %v230
    %687 = vmatprep.subr.mxu0 0.0
    %688 = vmatpush1.msra.mxu0 %v231
    %689 = vmatprep.subr.mxu0 0.0
    %690 = vmatpush1.msra.mxu0 %v232
    %691 = vmatprep.subr.mxu0 0.0
    %692 = vmatpush1.msra.mxu0 %v233
    %693 = vmatprep.subr.mxu0 0.0
    %694 = vmatpush1.msra.mxu0 %v234
    %695 = vmatprep.subr.mxu0 0.0
    %696 = vmatpush1.msra.mxu0 %v235
    %697 = vmatprep.subr.mxu0 0.0
    %698 = vmatpush1.msra.mxu0 0.0
    %699 = vmatprep.subr.mxu0 0.0
    %700 = vmatpush1.msra.mxu0 0.0
    %701 = vmatprep.subr.mxu0 0.0
    %702 = vmatpush1.msra.mxu0 0.0
    %703 = vmatprep.subr.mxu0 0.0
    %704 = vmatpush1.msra.mxu0 0.0
    %705 = vmatprep.subr.mxu0 0.0
    %706 = vmatpush1.msra.mxu0 0.0
    %707 = vmatprep.subr.mxu0 0.0
    %708 = vmatpush1.msra.mxu0 0.0
    %709 = vmatprep.subr.mxu0 0.0
    %710 = vmatpush1.msra.mxu0 0.0
    %711 = vmatprep.subr.mxu0 0.0
    %712 = vmatpush1.msra.mxu0 0.0
    %713 = vmatprep.subr.mxu0 0.0
    %714 = vmatpush1.msra.mxu0 0.0
    %715 = vmatprep.subr.mxu0 0.0
    %716 = vmatpush1.msra.mxu0 0.0
    %717 = vmatprep.subr.mxu0 0.0
    %718 = vmatpush1.msra.mxu0 0.0
    %719 = vmatprep.subr.mxu0 0.0
    %720 = vmatpush1.msra.mxu0 0.0
    %721 = vmatprep.subr.mxu0 0.0
    %722 = vmatpush1.msra.mxu0 0.0
    %723 = vmatprep.subr.mxu0 0.0
    %724 = vmatpush1.msra.mxu0 0.0
    %725 = vmatprep.subr.mxu0 0.0
    %726 = vmatpush1.msra.mxu0 0.0
    %727 = vmatprep.subr.mxu0 0.0
    %728 = vmatpush1.msra.mxu0 0.0
    %729 = vmatprep.mubr.f32.mxu0 0.0
    %730 = vmatmul.mubr.f32.gmra.mrb[0].mxu0 %v586
    %v731 = vpop.f32.mrb[0].mxu0
    %v732 = vadd.f32 %v657, %v731
    %v733 = vpop.f32.mrb[0].mxu0
    %734 = vmatprep.mubr.f32.mxu0 0.0
    %735 = vmatmul.mubr.f32.gmra.mrb[0].mxu0 %v589
    %v736 = vpop.f32.mrb[0].mxu0
    %v737 = vadd.f32 %v662, %v736
    %v738 = vpop.f32.mrb[0].mxu0
    %739 = vdwg.mxu0
    %740 = vst [vmem:[#allocation11] sm:$0xff] %v732
    %741 = vst [vmem:[#allocation11 + $0x8] sm:$0xff] %v737
    %v742 = vld [vmem:[#allocation5] sm:$0xff]
    %v743 = vld [vmem:[#allocation5 + $0x8] sm:$0xff]
    %744 = vmatprep.subr.mxu0 %v93
    %745 = vmatpush1.msra.mxu0 %v92
    %746 = vmatprep.subr.mxu0 %v96
    %747 = vmatpush1.msra.mxu0 %v95
    %748 = vmatprep.subr.mxu0 %v99
    %749 = vmatpush1.msra.mxu0 %v98
    %750 = vmatprep.subr.mxu0 %v102
    %751 = vmatpush1.msra.mxu0 %v101
    %752 = vmatprep.subr.mxu0 %v105
    %753 = vmatpush1.msra.mxu0 %v104
    %754 = vmatprep.subr.mxu0 %v108
    %755 = vmatpush1.msra.mxu0 %v107
    %756 = vmatprep.subr.mxu0 %v111
    %757 = vmatpush1.msra.mxu0 %v110
    %758 = vmatprep.subr.mxu0 %v114
    %759 = vmatpush1.msra.mxu0 %v113
    %760 = vmatprep.subr.mxu0 %v117
    %761 = vmatpush1.msra.mxu0 %v116
    %762 = vmatprep.subr.mxu0 %v120
    %763 = vmatpush1.msra.mxu0 %v119
    %764 = vmatprep.subr.mxu0 %v123
    %765 = vmatpush1.msra.mxu0 %v122
    %766 = vmatprep.subr.mxu0 %v126
    %767 = vmatpush1.msra.mxu0 %v125
    %768 = vmatprep.subr.mxu0 %v129
    %769 = vmatpush1.msra.mxu0 %v128
    %770 = vmatprep.subr.mxu0 %v132
    %771 = vmatpush1.msra.mxu0 %v131
    %772 = vmatprep.subr.mxu0 %v135
    %773 = vmatpush1.msra.mxu0 %v134
    %774 = vmatprep.subr.mxu0 %v138
    %775 = vmatpush1.msra.mxu0 %v137
    %776 = vmatprep.subr.mxu0 0.0
    %777 = vmatpush1.msra.mxu0 0.0
    %778 = vmatprep.subr.mxu0 0.0
    %779 = vmatpush1.msra.mxu0 0.0
    %780 = vmatprep.subr.mxu0 0.0
    %781 = vmatpush1.msra.mxu0 0.0
    %782 = vmatprep.subr.mxu0 0.0
    %783 = vmatpush1.msra.mxu0 0.0
    %784 = vmatprep.subr.mxu0 0.0
    %785 = vmatpush1.msra.mxu0 0.0
    %786 = vmatprep.subr.mxu0 0.0
    %787 = vmatpush1.msra.mxu0 0.0
    %788 = vmatprep.subr.mxu0 0.0
    %789 = vmatpush1.msra.mxu0 0.0
    %790 = vmatprep.subr.mxu0 0.0
    %791 = vmatpush1.msra.mxu0 0.0
    %792 = vmatprep.subr.mxu0 0.0
    %793 = vmatpush1.msra.mxu0 0.0
    %794 = vmatprep.subr.mxu0 0.0
    %795 = vmatpush1.msra.mxu0 0.0
    %796 = vmatprep.subr.mxu0 0.0
    %797 = vmatpush1.msra.mxu0 0.0
    %798 = vmatprep.subr.mxu0 0.0
    %799 = vmatpush1.msra.mxu0 0.0
    %800 = vmatprep.subr.mxu0 0.0
    %801 = vmatpush1.msra.mxu0 0.0
    %802 = vmatprep.subr.mxu0 0.0
    %803 = vmatpush1.msra.mxu0 0.0
    %804 = vmatprep.subr.mxu0 0.0
    %805 = vmatpush1.msra.mxu0 0.0
    %806 = vmatprep.subr.mxu0 0.0
    %807 = vmatpush1.msra.mxu0 0.0
    %808 = vmatprep.mubr.f32.mxu0 0.0
    %809 = vmatmul.mubr.f32.gmra.mrb[0].mxu0 %v742
    %v810 = vpop.f32.mrb[0].mxu0
    %v811 = vadd.f32 0.0, %v810
    %v812 = vpop.f32.mrb[0].mxu0
    %v813 = vadd.f32 0.0, %v812
    %814 = vmatprep.mubr.f32.mxu0 0.0
    %815 = vmatmul.mubr.f32.gmra.mrb[0].mxu0 %v743
    %v816 = vpop.f32.mrb[0].mxu0
    %v817 = vadd.f32 0.0, %v816
    %v818 = vpop.f32.mrb[0].mxu0
    %v819 = vadd.f32 0.0, %v818
    %820 = vdwg.mxu0
    %821 = vmatprep.subr.mxu0 0.0
    %822 = vmatpush1.msra.mxu0 %v94
    %823 = vmatprep.subr.mxu0 0.0
    %824 = vmatpush1.msra.mxu0 %v97
    %825 = vmatprep.subr.mxu0 0.0
    %826 = vmatpush1.msra.mxu0 %v100
    %827 = vmatprep.subr.mxu0 0.0
    %828 = vmatpush1.msra.mxu0 %v103
    %829 = vmatprep.subr.mxu0 0.0
    %830 = vmatpush1.msra.mxu0 %v106
    %831 = vmatprep.subr.mxu0 0.0
    %832 = vmatpush1.msra.mxu0 %v109
    %833 = vmatprep.subr.mxu0 0.0
    %834 = vmatpush1.msra.mxu0 %v112
    %835 = vmatprep.subr.mxu0 0.0
    %836 = vmatpush1.msra.mxu0 %v115
    %837 = vmatprep.subr.mxu0 0.0
    %838 = vmatpush1.msra.mxu0 %v118
    %839 = vmatprep.subr.mxu0 0.0
    %840 = vmatpush1.msra.mxu0 %v121
    %841 = vmatprep.subr.mxu0 0.0
    %842 = vmatpush1.msra.mxu0 %v124
    %843 = vmatprep.subr.mxu0 0.0
    %844 = vmatpush1.msra.mxu0 %v127
    %845 = vmatprep.subr.mxu0 0.0
    %846 = vmatpush1.msra.mxu0 %v130
    %847 = vmatprep.subr.mxu0 0.0
    %848 = vmatpush1.msra.mxu0 %v133
    %849 = vmatprep.subr.mxu0 0.0
    %850 = vmatpush1.msra.mxu0 %v136
    %851 = vmatprep.subr.mxu0 0.0
    %852 = vmatpush1.msra.mxu0 %v139
    %853 = vmatprep.subr.mxu0 0.0
    %854 = vmatpush1.msra.mxu0 0.0
    %855 = vmatprep.subr.mxu0 0.0
    %856 = vmatpush1.msra.mxu0 0.0
    %857 = vmatprep.subr.mxu0 0.0
    %858 = vmatpush1.msra.mxu0 0.0
    %859 = vmatprep.subr.mxu0 0.0
    %860 = vmatpush1.msra.mxu0 0.0
    %861 = vmatprep.subr.mxu0 0.0
    %862 = vmatpush1.msra.mxu0 0.0
    %863 = vmatprep.subr.mxu0 0.0
    %864 = vmatpush1.msra.mxu0 0.0
    %865 = vmatprep.subr.mxu0 0.0
    %866 = vmatpush1.msra.mxu0 0.0
    %867 = vmatprep.subr.mxu0 0.0
    %868 = vmatpush1.msra.mxu0 0.0
    %869 = vmatprep.subr.mxu0 0.0
    %870 = vmatpush1.msra.mxu0 0.0
    %871 = vmatprep.subr.mxu0 0.0
    %872 = vmatpush1.msra.mxu0 0.0
    %873 = vmatprep.subr.mxu0 0.0
    %874 = vmatpush1.msra.mxu0 0.0
    %875 = vmatprep.subr.mxu0 0.0
    %876 = vmatpush1.msra.mxu0 0.0
    %877 = vmatprep.subr.mxu0 0.0
    %878 = vmatpush1.msra.mxu0 0.0
    %879 = vmatprep.subr.mxu0 0.0
    %880 = vmatpush1.msra.mxu0 0.0
    %881 = vmatprep.subr.mxu0 0.0
    %882 = vmatpush1.msra.mxu0 0.0
    %883 = vmatprep.subr.mxu0 0.0
    %884 = vmatpush1.msra.mxu0 0.0
    %885 = vmatprep.mubr.f32.mxu0 0.0
    %886 = vmatmul.mubr.f32.gmra.mrb[0].mxu0 %v742
    %v887 = vpop.f32.mrb[0].mxu0
    %v888 = vadd.f32 0.0, %v887
    %v889 = vpop.f32.mrb[0].mxu0
    %890 = vmatprep.mubr.f32.mxu0 0.0
    %891 = vmatmul.mubr.f32.gmra.mrb[0].mxu0 %v743
    %v892 = vpop.f32.mrb[0].mxu0
    %v893 = vadd.f32 0.0, %v892
    %v894 = vpop.f32.mrb[0].mxu0
    %895 = vdwg.mxu0
    %896 = vmatprep.subr.mxu0 %v141
    %897 = vmatpush1.msra.mxu0 %v140
    %898 = vmatprep.subr.mxu0 %v144
    %899 = vmatpush1.msra.mxu0 %v143
    %900 = vmatprep.subr.mxu0 %v147
    %901 = vmatpush1.msra.mxu0 %v146
    %902 = vmatprep.subr.mxu0 %v150
    %903 = vmatpush1.msra.mxu0 %v149
    %904 = vmatprep.subr.mxu0 %v153
    %905 = vmatpush1.msra.mxu0 %v152
    %906 = vmatprep.subr.mxu0 %v156
    %907 = vmatpush1.msra.mxu0 %v155
    %908 = vmatprep.subr.mxu0 %v159
    %909 = vmatpush1.msra.mxu0 %v158
    %910 = vmatprep.subr.mxu0 %v162
    %911 = vmatpush1.msra.mxu0 %v161
    %912 = vmatprep.subr.mxu0 %v165
    %913 = vmatpush1.msra.mxu0 %v164
    %914 = vmatprep.subr.mxu0 %v168
    %915 = vmatpush1.msra.mxu0 %v167
    %916 = vmatprep.subr.mxu0 %v171
    %917 = vmatpush1.msra.mxu0 %v170
    %918 = vmatprep.subr.mxu0 %v174
    %919 = vmatpush1.msra.mxu0 %v173
    %920 = vmatprep.subr.mxu0 %v177
    %921 = vmatpush1.msra.mxu0 %v176
    %922 = vmatprep.subr.mxu0 %v180
    %923 = vmatpush1.msra.mxu0 %v179
    %924 = vmatprep.subr.mxu0 %v183
    %925 = vmatpush1.msra.mxu0 %v182
    %926 = vmatprep.subr.mxu0 %v186
    %927 = vmatpush1.msra.mxu0 %v185
    %928 = vmatprep.subr.mxu0 0.0
    %929 = vmatpush1.msra.mxu0 0.0
    %930 = vmatprep.subr.mxu0 0.0
    %931 = vmatpush1.msra.mxu0 0.0
    %932 = vmatprep.subr.mxu0 0.0
    %933 = vmatpush1.msra.mxu0 0.0
    %934 = vmatprep.subr.mxu0 0.0
    %935 = vmatpush1.msra.mxu0 0.0
    %936 = vmatprep.subr.mxu0 0.0
    %937 = vmatpush1.msra.mxu0 0.0
    %938 = vmatprep.subr.mxu0 0.0
    %939 = vmatpush1.msra.mxu0 0.0
    %940 = vmatprep.subr.mxu0 0.0
    %941 = vmatpush1.msra.mxu0 0.0
    %942 = vmatprep.subr.mxu0 0.0
    %943 = vmatpush1.msra.mxu0 0.0
    %944 = vmatprep.subr.mxu0 0.0
    %945 = vmatpush1.msra.mxu0 0.0
    %946 = vmatprep.subr.mxu0 0.0
    %947 = vmatpush1.msra.mxu0 0.0
    %948 = vmatprep.subr.mxu0 0.0
    %949 = vmatpush1.msra.mxu0 0.0
    %950 = vmatprep.subr.mxu0 0.0
    %951 = vmatpush1.msra.mxu0 0.0
    %952 = vmatprep.subr.mxu0 0.0
    %953 = vmatpush1.msra.mxu0 0.0
    %954 = vmatprep.subr.mxu0 0.0
    %955 = vmatpush1.msra.mxu0 0.0
    %956 = vmatprep.subr.mxu0 0.0
    %957 = vmatpush1.msra.mxu0 0.0
    %958 = vmatprep.subr.mxu0 0.0
    %959 = vmatpush1.msra.mxu0 0.0
    %960 = vmatprep.mubr.f32.mxu0 0.0
    %961 = vmatmul.mubr.f32.gmra.mrb[0].mxu0 %v742
    %v962 = vpop.f32.mrb[0].mxu0
    %v963 = vadd.f32 0.0, %v962
    %v964 = vpop.f32.mrb[0].mxu0
    %v965 = vadd.f32 0.0, %v964
    %966 = vmatprep.mubr.f32.mxu0 0.0
    %967 = vmatmul.mubr.f32.gmra.mrb[0].mxu0 %v743
    %v968 = vpop.f32.mrb[0].mxu0
    %v969 = vadd.f32 0.0, %v968
    %v970 = vpop.f32.mrb[0].mxu0
    %v971 = vadd.f32 0.0, %v970
    %972 = vdwg.mxu0
    %973 = vmatprep.subr.mxu0 0.0
    %974 = vmatpush1.msra.mxu0 %v142
    %975 = vmatprep.subr.mxu0 0.0
    %976 = vmatpush1.msra.mxu0 %v145
    %977 = vmatprep.subr.mxu0 0.0
    %978 = vmatpush1.msra.mxu0 %v148
    %979 = vmatprep.subr.mxu0 0.0
    %980 = vmatpush1.msra.mxu0 %v151
    %981 = vmatprep.subr.mxu0 0.0
    %982 = vmatpush1.msra.mxu0 %v154
    %983 = vmatprep.subr.mxu0 0.0
    %984 = vmatpush1.msra.mxu0 %v157
    %985 = vmatprep.subr.mxu0 0.0
    %986 = vmatpush1.msra.mxu0 %v160
    %987 = vmatprep.subr.mxu0 0.0
    %988 = vmatpush1.msra.mxu0 %v163
    %989 = vmatprep.subr.mxu0 0.0
    %990 = vmatpush1.msra.mxu0 %v166
    %991 = vmatprep.subr.mxu0 0.0
    %992 = vmatpush1.msra.mxu0 %v169
    %993 = vmatprep.subr.mxu0 0.0
    %994 = vmatpush1.msra.mxu0 %v172
    %995 = vmatprep.subr.mxu0 0.0
    %996 = vmatpush1.msra.mxu0 %v175
    %997 = vmatprep.subr.mxu0 0.0
    %998 = vmatpush1.msra.mxu0 %v178
    %999 = vmatprep.subr.mxu0 0.0
    %1000 = vmatpush1.msra.mxu0 %v181
    %1001 = vmatprep.subr.mxu0 0.0
    %1002 = vmatpush1.msra.mxu0 %v184
    %1003 = vmatprep.subr.mxu0 0.0
    %1004 = vmatpush1.msra.mxu0 %v187
    %1005 = vmatprep.subr.mxu0 0.0
    %1006 = vmatpush1.msra.mxu0 0.0
    %1007 = vmatprep.subr.mxu0 0.0
    %1008 = vmatpush1.msra.mxu0 0.0
    %1009 = vmatprep.subr.mxu0 0.0
    %1010 = vmatpush1.msra.mxu0 0.0
    %1011 = vmatprep.subr.mxu0 0.0
    %1012 = vmatpush1.msra.mxu0 0.0
    %1013 = vmatprep.subr.mxu0 0.0
    %1014 = vmatpush1.msra.mxu0 0.0
    %1015 = vmatprep.subr.mxu0 0.0
    %1016 = vmatpush1.msra.mxu0 0.0
    %1017 = vmatprep.subr.mxu0 0.0
    %1018 = vmatpush1.msra.mxu0 0.0
    %1019 = vmatprep.subr.mxu0 0.0
    %1020 = vmatpush1.msra.mxu0 0.0
    %1021 = vmatprep.subr.mxu0 0.0
    %1022 = vmatpush1.msra.mxu0 0.0
    %1023 = vmatprep.subr.mxu0 0.0
    %1024 = vmatpush1.msra.mxu0 0.0
    %1025 = vmatprep.subr.mxu0 0.0
    %1026 = vmatpush1.msra.mxu0 0.0
    %1027 = vmatprep.subr.mxu0 0.0
    %1028 = vmatpush1.msra.mxu0 0.0
    %1029 = vmatprep.subr.mxu0 0.0
    %1030 = vmatpush1.msra.mxu0 0.0
    %1031 = vmatprep.subr.mxu0 0.0
    %1032 = vmatpush1.msra.mxu0 0.0
    %1033 = vmatprep.subr.mxu0 0.0
    %1034 = vmatpush1.msra.mxu0 0.0
    %1035 = vmatprep.subr.mxu0 0.0
    %1036 = vmatpush1.msra.mxu0 0.0
    %1037 = vmatprep.mubr.f32.mxu0 0.0
    %1038 = vmatmul.mubr.f32.gmra.mrb[0].mxu0 %v742
    %v1039 = vpop.f32.mrb[0].mxu0
    %v1040 = vadd.f32 0.0, %v1039
    %v1041 = vpop.f32.mrb[0].mxu0
    %1042 = vmatprep.mubr.f32.mxu0 0.0
    %1043 = vmatmul.mubr.f32.gmra.mrb[0].mxu0 %v743
    %v1044 = vpop.f32.mrb[0].mxu0
    %v1045 = vadd.f32 0.0, %v1044
    %v1046 = vpop.f32.mrb[0].mxu0
    %1047 = vdwg.mxu0
    %v1048 = vxor.u32 %v963, 2147483648
    %v1049 = vxor.u32 %v965, 2147483648
    %v1050 = vxor.u32 %v1040, 2147483648
    %v1051 = vxor.u32 %v969, 2147483648
    %v1052 = vxor.u32 %v971, 2147483648
    %v1053 = vxor.u32 %v1045, 2147483648
    %v1054 = vmul.f32 %v1048, 1.442695
    %v1055 = vpow.pop %v1054
    %v1056 = vmul.f32 %v1049, 1.442695
    %v1057 = vpow.pop %v1056
    %v1058 = vmul.f32 %v1050, 1.442695
    %v1059 = vpow.pop %v1058
    %v1060 = vmul.f32 %v1051, 1.442695
    %v1061 = vpow.pop %v1060
    %v1062 = vmul.f32 %v1052, 1.442695
    %v1063 = vpow.pop %v1062
    %v1064 = vmul.f32 %v1053, 1.442695
    %v1065 = vpow.pop %v1064
    %v1066 = vadd.f32 %v1055, 1.0
    %v1067 = vadd.f32 %v1057, 1.0
    %v1068 = vadd.f32 %v1059, 1.0
    %v1069 = vadd.f32 %v1061, 1.0
    %v1070 = vadd.f32 %v1063, 1.0
    %v1071 = vadd.f32 %v1065, 1.0
    %v1072 = vrcp.pop %v1066
    %v1073 = vmul.f32 1.0, %v1072
    %v1074 = vrcp.pop %v1067
    %v1075 = vmul.f32 1.0, %v1074
    %v1076 = vrcp.pop %v1068
    %v1077 = vmul.f32 1.0, %v1076
    %v1078 = vrcp.pop %v1069
    %v1079 = vmul.f32 1.0, %v1078
    %v1080 = vrcp.pop %v1070
    %v1081 = vmul.f32 1.0, %v1080
    %v1082 = vrcp.pop %v1071
    %v1083 = vmul.f32 1.0, %v1082
    %v1084 = vmul.f32 %v963, %v1073
    %v1085 = vmul.f32 %v965, %v1075
    %v1086 = vmul.f32 %v1040, %v1077
    %v1087 = vmul.f32 %v969, %v1079
    %v1088 = vmul.f32 %v971, %v1081
    %v1089 = vmul.f32 %v1045, %v1083
    %v1090 = vmul.f32 %v811, %v1084
    %v1091 = vmul.f32 %v813, %v1085
    %v1092 = vmul.f32 %v888, %v1086
    %v1093 = vmul.f32 %v817, %v1087
    %v1094 = vmul.f32 %v819, %v1088
    %v1095 = vmul.f32 %v893, %v1089
    %1096 = vmatprep.subr.mxu0 0.0
    %1097 = vmatpush1.msra.mxu0 %v188
    %1098 = vmatprep.subr.mxu0 0.0
    %1099 = vmatpush1.msra.mxu0 %v189
    %1100 = vmatprep.subr.mxu0 0.0
    %1101 = vmatpush1.msra.mxu0 %v190
    %1102 = vmatprep.subr.mxu0 0.0
    %1103 = vmatpush1.msra.mxu0 %v191
    %1104 = vmatprep.subr.mxu0 0.0
    %1105 = vmatpush1.msra.mxu0 %v192
    %1106 = vmatprep.subr.mxu0 0.0
    %1107 = vmatpush1.msra.mxu0 %v193
    %1108 = vmatprep.subr.mxu0 0.0
    %1109 = vmatpush1.msra.mxu0 %v194
    %1110 = vmatprep.subr.mxu0 0.0
    %1111 = vmatpush1.msra.mxu0 %v195
    %1112 = vmatprep.subr.mxu0 0.0
    %1113 = vmatpush1.msra.mxu0 %v196
    %1114 = vmatprep.subr.mxu0 0.0
    %1115 = vmatpush1.msra.mxu0 %v197
    %1116 = vmatprep.subr.mxu0 0.0
    %1117 = vmatpush1.msra.mxu0 %v198
    %1118 = vmatprep.subr.mxu0 0.0
    %1119 = vmatpush1.msra.mxu0 %v199
    %1120 = vmatprep.subr.mxu0 0.0
    %1121 = vmatpush1.msra.mxu0 %v200
    %1122 = vmatprep.subr.mxu0 0.0
    %1123 = vmatpush1.msra.mxu0 %v201
    %1124 = vmatprep.subr.mxu0 0.0
    %1125 = vmatpush1.msra.mxu0 %v202
    %1126 = vmatprep.subr.mxu0 0.0
    %1127 = vmatpush1.msra.mxu0 %v203
    %1128 = vmatprep.subr.mxu0 0.0
    %1129 = vmatpush1.msra.mxu0 %v204
    %1130 = vmatprep.subr.mxu0 0.0
    %1131 = vmatpush1.msra.mxu0 %v205
    %1132 = vmatprep.subr.mxu0 0.0
    %1133 = vmatpush1.msra.mxu0 %v206
    %1134 = vmatprep.subr.mxu0 0.0
    %1135 = vmatpush1.msra.mxu0 %v207
    %1136 = vmatprep.subr.mxu0 0.0
    %1137 = vmatpush1.msra.mxu0 %v208
    %1138 = vmatprep.subr.mxu0 0.0
    %1139 = vmatpush1.msra.mxu0 %v209
    %1140 = vmatprep.subr.mxu0 0.0
    %1141 = vmatpush1.msra.mxu0 %v210
    %1142 = vmatprep.subr.mxu0 0.0
    %1143 = vmatpush1.msra.mxu0 %v211
    %1144 = vmatprep.subr.mxu0 0.0
    %1145 = vmatpush1.msra.mxu0 %v212
    %1146 = vmatprep.subr.mxu0 0.0
    %1147 = vmatpush1.msra.mxu0 %v213
    %1148 = vmatprep.subr.mxu0 0.0
    %1149 = vmatpush1.msra.mxu0 %v214
    %1150 = vmatprep.subr.mxu0 0.0
    %1151 = vmatpush1.msra.mxu0 %v215
    %1152 = vmatprep.subr.mxu0 0.0
    %1153 = vmatpush1.msra.mxu0 %v216
    %1154 = vmatprep.subr.mxu0 0.0
    %1155 = vmatpush1.msra.mxu0 %v217
    %1156 = vmatprep.subr.mxu0 0.0
    %1157 = vmatpush1.msra.mxu0 %v218
    %1158 = vmatprep.subr.mxu0 0.0
    %1159 = vmatpush1.msra.mxu0 %v219
    %1160 = vmatprep.mubr.f32.mxu0 %v1091
    %1161 = vmatmul.mubr.f32.gmra.mrb[0].mxu0 %v1090
    %v1162 = vpop.f32.mrb[0].mxu0
    %v1163 = vadd.f32 0.0, %v1162
    %v1164 = vpop.f32.mrb[0].mxu0
    %1165 = vmatprep.mubr.f32.mxu0 %v1094
    %1166 = vmatmul.mubr.f32.gmra.mrb[0].mxu0 %v1093
    %v1167 = vpop.f32.mrb[0].mxu0
    %v1168 = vadd.f32 0.0, %v1167
    %v1169 = vpop.f32.mrb[0].mxu0
    %1170 = vdwg.mxu0
    %1171 = vmatprep.subr.mxu0 0.0
    %1172 = vmatpush1.msra.mxu0 %v220
    %1173 = vmatprep.subr.mxu0 0.0
    %1174 = vmatpush1.msra.mxu0 %v221
    %1175 = vmatprep.subr.mxu0 0.0
    %1176 = vmatpush1.msra.mxu0 %v222
    %1177 = vmatprep.subr.mxu0 0.0
    %1178 = vmatpush1.msra.mxu0 %v223
    %1179 = vmatprep.subr.mxu0 0.0
    %1180 = vmatpush1.msra.mxu0 %v224
    %1181 = vmatprep.subr.mxu0 0.0
    %1182 = vmatpush1.msra.mxu0 %v225
    %1183 = vmatprep.subr.mxu0 0.0
    %1184 = vmatpush1.msra.mxu0 %v226
    %1185 = vmatprep.subr.mxu0 0.0
    %1186 = vmatpush1.msra.mxu0 %v227
    %1187 = vmatprep.subr.mxu0 0.0
    %1188 = vmatpush1.msra.mxu0 %v228
    %1189 = vmatprep.subr.mxu0 0.0
    %1190 = vmatpush1.msra.mxu0 %v229
    %1191 = vmatprep.subr.mxu0 0.0
    %1192 = vmatpush1.msra.mxu0 %v230
    %1193 = vmatprep.subr.mxu0 0.0
    %1194 = vmatpush1.msra.mxu0 %v231
    %1195 = vmatprep.subr.mxu0 0.0
    %1196 = vmatpush1.msra.mxu0 %v232
    %1197 = vmatprep.subr.mxu0 0.0
    %1198 = vmatpush1.msra.mxu0 %v233
    %1199 = vmatprep.subr.mxu0 0.0
    %1200 = vmatpush1.msra.mxu0 %v234
    %1201 = vmatprep.subr.mxu0 0.0
    %1202 = vmatpush1.msra.mxu0 %v235
    %1203 = vmatprep.subr.mxu0 0.0
    %1204 = vmatpush1.msra.mxu0 0.0
    %1205 = vmatprep.subr.mxu0 0.0
    %1206 = vmatpush1.msra.mxu0 0.0
    %1207 = vmatprep.subr.mxu0 0.0
    %1208 = vmatpush1.msra.mxu0 0.0
    %1209 = vmatprep.subr.mxu0 0.0
    %1210 = vmatpush1.msra.mxu0 0.0
    %1211 = vmatprep.subr.mxu0 0.0
    %1212 = vmatpush1.msra.mxu0 0.0
    %1213 = vmatprep.subr.mxu0 0.0
    %1214 = vmatpush1.msra.mxu0 0.0
    %1215 = vmatprep.subr.mxu0 0.0
    %1216 = vmatpush1.msra.mxu0 0.0
    %1217 = vmatprep.subr.mxu0 0.0
    %1218 = vmatpush1.msra.mxu0 0.0
    %1219 = vmatprep.subr.mxu0 0.0
    %1220 = vmatpush1.msra.mxu0 0.0
    %1221 = vmatprep.subr.mxu0 0.0
    %1222 = vmatpush1.msra.mxu0 0.0
    %1223 = vmatprep.subr.mxu0 0.0
    %1224 = vmatpush1.msra.mxu0 0.0
    %1225 = vmatprep.subr.mxu0 0.0
    %1226 = vmatpush1.msra.mxu0 0.0
    %1227 = vmatprep.subr.mxu0 0.0
    %1228 = vmatpush1.msra.mxu0 0.0
    %1229 = vmatprep.subr.mxu0 0.0
    %1230 = vmatpush1.msra.mxu0 0.0
    %1231 = vmatprep.subr.mxu0 0.0
    %1232 = vmatpush1.msra.mxu0 0.0
    %1233 = vmatprep.subr.mxu0 0.0
    %1234 = vmatpush1.msra.mxu0 0.0
    %1235 = vmatprep.mubr.f32.mxu0 0.0
    %1236 = vmatmul.mubr.f32.gmra.mrb[0].mxu0 %v1092
    %v1237 = vpop.f32.mrb[0].mxu0
    %v1238 = vadd.f32 %v1163, %v1237
    %v1239 = vpop.f32.mrb[0].mxu0
    %1240 = vmatprep.mubr.f32.mxu0 0.0
    %1241 = vmatmul.mubr.f32.gmra.mrb[0].mxu0 %v1095
    %v1242 = vpop.f32.mrb[0].mxu0
    %v1243 = vadd.f32 %v1168, %v1242
    %v1244 = vpop.f32.mrb[0].mxu0
    %1245 = vdwg.mxu0
    %1246 = vst [vmem:[#allocation12] sm:$0xff] %v1238
    %1247 = vst [vmem:[#allocation12 + $0x8] sm:$0xff] %v1243
    // Predicated region
    $region42: #{tpu_custom_call.1} parent=1 // pred_check
      _
    $region43: #{tpu_custom_call.1} parent=1 // pred_check_branch
      %1249 = sbr.rel (0) target = $region45
    $region44: #{tpu_custom_call.1} parent=1 // pred_region
      %s1251 = ssub.s32 256, 256
      %1252 = vsyncadd [#allocation4], %s1251
      %s1253 = sshll.u32 [#allocation11], 4
      %s1254 = int_to_ptr.vmem [resolvable:$true] %s1253
      %1259 = dma.vmem_to_hbm [thread:$0]  %s1254, 256, %s5, [#allocation4], 128, 128, 8
    $region45: #{tpu_custom_call.1} parent=1 // pred_fallthru
      _
    // Predicated region
    $region46: #{tpu_custom_call.1} parent=1 // pred_check
      _
    $region47: #{tpu_custom_call.1} parent=1 // pred_check_branch
      %1261 = sbr.rel (0) target = $region49
    $region48: #{tpu_custom_call.1} parent=1 // pred_region
      %s1263 = ssub.s32 256, 256
      %1264 = vsyncadd [#allocation13], %s1263
      %s1265 = sshll.u32 [#allocation12], 4
      %s1266 = int_to_ptr.vmem [resolvable:$true] %s1265
      %1271 = dma.vmem_to_hbm [thread:$0]  %s1266, 256, %s6, [#allocation13], 128, 128, 8
    $region49: #{tpu_custom_call.1} parent=1 // pred_fallthru
      _
    // Predicated region
    $region50: #{tpu_custom_call.1} parent=1 // pred_check
      _
    $region51: #{tpu_custom_call.1} parent=1 // pred_check_branch
      %1273 = sbr.rel (0) target = $region53
    $region52: #{tpu_custom_call.1} parent=1 // pred_region
      %1274 = dma.done [#allocation4], 256
    $region53: #{tpu_custom_call.1} parent=1 // pred_fallthru
      _
    // Predicated region
    $region54: #{tpu_custom_call.1} parent=1 // pred_check
      _
    $region55: #{tpu_custom_call.1} parent=1 // pred_check_branch
      %1276 = sbr.rel (0) target = $region57
    $region56: #{tpu_custom_call.1} parent=1 // pred_region
      %1277 = dma.done [#allocation13], 256
    $region57: #{tpu_custom_call.1} parent=1 // pred_fallthru
      _
    %1278 = vsyncpa [#allocation3], 1
    %1279 = vsyncpa [#allocation6], 1
    %1280 = vsyncpa [#allocation9], 1
    %1281 = vsyncpa [#allocation4], 1
    %1282 = vsyncpa [#allocation13], 1

</llo_original>
